<compile_context>
chip_gen: v6e
topology: v6e:2x2x1
jax: 0.10.0
libtpu: 0.0.40
codegen_flags: <defaults>
</compile_context>

<pallas_src>
import functools
from typing import NamedTuple

import jax
import jax.numpy as jnp
from jax.experimental import pallas as pl
from jax.experimental.pallas import tpu as pltpu

_COMPUTE_DTYPE = jnp.bfloat16   # MXU operand dtype (accumulation stays f32)
_TILE_CAP = 512                 # max batch-tile rows
_VMEM_LIMIT = 32 * 1024 * 1024  # explicit scoped-VMEM limit (safe v5e..v7x)


# --------------------------- hardware queries --------------------------------
def _num_tensorcores() -> int:
    """2 on v7x (the 'parallel' grid axis shards across TensorCores), else 1."""
    try:
        kind = jax.devices()[0].device_kind.lower()
        if "v7" in kind:
            return 2
    except Exception:
        pass
    return 1


_SINGLE_BUFFER_OK = None


def _single_buffer_supported() -> bool:
    """Probe (once, outside any jit) whether pipeline_mode=pl.Buffered(1)
    compiles and runs; fall back to default buffering otherwise."""
    global _SINGLE_BUFFER_OK
    if _SINGLE_BUFFER_OK is not None:
        return _SINGLE_BUFFER_OK
    try:
        def _probe_kernel(x_ref, o_ref):
            o_ref[...] = x_ref[...]

        spec = pl.BlockSpec((8, 128), lambda i: (0, 0),
                            pipeline_mode=pl.Buffered(1))
        out = pl.pallas_call(
            _probe_kernel,
            grid=(1,),
            in_specs=[spec],
            out_specs=pl.BlockSpec((8, 128), lambda i: (0, 0)),
            out_shape=jax.ShapeDtypeStruct((8, 128), jnp.float32),
        )(jnp.zeros((8, 128), jnp.float32))
        jax.block_until_ready(out)
        _SINGLE_BUFFER_OK = True
    except Exception:
        _SINGLE_BUFFER_OK = False
    return _SINGLE_BUFFER_OK


# ----------------------------- kernel ----------------------------------------
def _npr_kernel(
    x_ref,
    w1_ref, b1_ref,
    w2_ref, b2_ref,
    w3_ref, b3_ref,
    wh_ref, bh_ref,    # fused head-input weights  [wc1 | wv1]
    wo_ref, bo_ref,    # packed, zero-padded head-output weights [wc2 | wv2]
    enc_ref, head_ref,
):
    cdt = w1_ref.dtype

    # encoder: Linear->ReLU->(Dropout=id)->Linear->ReLU->(Dropout=id)->Linear
    x = x_ref[...].astype(cdt)      # f32 -> bf16 in-kernel (halves x HBM bytes)
    h1 = jnp.dot(x, w1_ref[...], preferred_element_type=jnp.float32) + b1_ref[...]
    h1 = jnp.maximum(h1, 0.0).astype(cdt)
    h2 = jnp.dot(h1, w2_ref[...], preferred_element_type=jnp.float32) + b2_ref[...]
    h2 = jnp.maximum(h2, 0.0).astype(cdt)
    enc = jnp.dot(h2, w3_ref[...], preferred_element_type=jnp.float32) + b3_ref[...]
    enc_ref[...] = enc.astype(enc_ref.dtype)

    # fused heads: one matmul for [classifier.0 | value.0] -> ReLU -> one
    # packed 128-lane-wide matmul for [classifier.2 | value.2].
    eh = enc.astype(cdt)
    h = jnp.dot(eh, wh_ref[...], preferred_element_type=jnp.float32) + bh_ref[...]
    h = jnp.maximum(h, 0.0).astype(cdt)
    out = jnp.dot(h, wo_ref[...], preferred_element_type=jnp.float32) + bo_ref[...]
    head_ref[...] = out.astype(head_ref.dtype)


# ----------------------------- one-time param packing ------------------------
class HeadMeta(NamedTuple):
    n_classes: int
    n_value: int


def pack_params(params):
    """One-time packing (NOT per call): fuse head weights, zero-pad the final
    head matmul to a 128-lane slab, cast matmul operands to bf16."""
    (w1, b1, w2, b2, w3, b3, wc1, bc1, wc2, bc2, wv1, bv1, wv2, bv2) = params
    half = wc1.shape[1]
    n_classes = int(wc2.shape[1])   # 10
    n_value = int(wv2.shape[1])     # 1

    w_heads = jnp.concatenate([wc1, wv1], axis=1)          # (output_dim, 2*half)
    b_heads = jnp.concatenate([bc1, bv1], axis=1)          # (1, 2*half)

    # head_dim rounds up in multiples of 128, so n_classes+n_value > 128 is
    # also handled without truncation.
    head_dim = max(128, ((n_classes + n_value + 127) // 128) * 128)
    w_out = jnp.zeros((2 * half, head_dim), jnp.float32)
    w_out = w_out.at[:half, :n_classes].set(wc2)
    w_out = w_out.at[half:, n_classes:n_classes + n_value].set(wv2)
    b_out = jnp.zeros((1, head_dim), jnp.float32)
    b_out = b_out.at[:, :n_classes].set(bc2)
    b_out = b_out.at[:, n_classes:n_classes + n_value].set(bv2)

    cdt = _COMPUTE_DTYPE
    arrays = (
        w1.astype(cdt), b1.astype(jnp.float32),
        w2.astype(cdt), b2.astype(jnp.float32),
        w3.astype(cdt), b3.astype(jnp.float32),
        w_heads.astype(cdt), b_heads.astype(jnp.float32),
        w_out.astype(cdt), b_out.astype(jnp.float32),
    )
    arrays = jax.block_until_ready(arrays)
    _single_buffer_supported()   # warm the probe outside the jitted forward
    return arrays, HeadMeta(n_classes, n_value)


# ----------------------------- tiling heuristic -------------------------------
def _choose_batch_tile(batch: int, n_cores: int, cap: int = _TILE_CAP) -> int:
    batch = max(int(batch), 1)
    if n_cores <= 1 or batch < 32:
        # Sequential grid (v5e/v6e) or tiny batch: one grid step when the batch
        # fits (no per-step pipeline overhead); else the largest multiple-of-8
        # tile <= cap, preferring an exact divisor so padding is skipped.
        if batch <= cap:
            return batch
        for t in range(cap, 7, -8):
            if batch % t == 0:
                return t
        return cap
    # v7x (2 TCs): aim for >=4 tiles (>=2 per core keeps DMA/compute overlap),
    # preferring a tile with an even tile count that divides the batch exactly.
    target = min(cap, max(8, (batch // 4) // 8 * 8))
    best_div = None
    for t in range(target, 7, -8):
        if batch % t == 0:
            if (batch // t) % 2 == 0:
                return t
            if best_div is None:
                best_div = t
    if best_div is not None:
        return best_div
    return target


# ----------------------------- forward ----------------------------------------
@functools.partial(jax.jit, static_argnums=(2, 3))
def _forward(x, arrays, meta, out_dtype):
    (w1c, b1, w2c, b2, w3c, b3, whc, bh, woc, bo) = arrays
    B, input_dim = x.shape
    output_dim = w3c.shape[1]
    head_dim = woc.shape[1]

    tile = _choose_batch_tile(B, _num_tensorcores())
    n_tiles = pl.cdiv(B, tile)
    b_pad = n_tiles * tile
    if b_pad != B:
        x = jnp.pad(x, ((0, b_pad - B), (0, 0)))

    single_buf = _SINGLE_BUFFER_OK is True

    def _replicated(arr):
        # Constant index map -> block never re-DMA'd across grid steps.
        idx = lambda i: (0, 0)
        if single_buf:
            return pl.BlockSpec(arr.shape, idx, pipeline_mode=pl.Buffered(1))
        return pl.BlockSpec(arr.shape, idx)

    in_specs = [
        pl.BlockSpec((tile, input_dim), lambda i: (i, 0)),
        _replicated(w1c), _replicated(b1),
        _replicated(w2c), _replicated(b2),
        _replicated(w3c), _replicated(b3),
        _replicated(whc), _replicated(bh),
        _replicated(woc), _replicated(bo),
    ]
    out_specs = [
        pl.BlockSpec((tile, output_dim), lambda i: (i, 0)),
        pl.BlockSpec((tile, head_dim), lambda i: (i, 0)),
    ]
    out_shape = [
        jax.ShapeDtypeStruct((b_pad, output_dim), out_dtype),
        jax.ShapeDtypeStruct((b_pad, head_dim), out_dtype),
    ]

    encoded, head = pl.pallas_call(
        _npr_kernel,
        grid=(n_tiles,),
        in_specs=in_specs,
        out_specs=out_specs,
        out_shape=out_shape,
        compiler_params=pltpu.CompilerParams(
            dimension_semantics=("parallel",),
            vmem_limit_bytes=_VMEM_LIMIT,
        ),
    )(x, w1c, b1, w2c, b2, w3c, b3, whc, bh, woc, bo)

    encoded = encoded[:B]
    pattern_logits = head[:B, :meta.n_classes]
    value = head[:B, meta.n_classes:meta.n_classes + meta.n_value]
    return encoded, pattern_logits, value


def neural_pattern_recognizer(x, packed, out_dtype=jnp.float32):
    """x: [B, input_dim] f32; packed = pack_params(params).
    Returns (encoded, pattern_logits, value).  Pass out_dtype=jnp.bfloat16 to
    halve HBM writeback (v6e-friendly) if the consumer tolerates bf16."""
    arrays, meta = packed
    return _forward(x, arrays, meta, out_dtype)


# ----------------------------- param init ------------------------------------
def init_params(key, input_dim=512, hidden_dim=256, output_dim=128):
    """PyTorch-Linear-style init.  Weights stored transposed as [in, out]."""

    def linear(key, fan_in, fan_out):
        kw, kb = jax.random.split(key)
        bound = 1.0 / jnp.sqrt(fan_in)
        w = jax.random.uniform(kw, (fan_in, fan_out), jnp.float32, -bound, bound)
        b = jax.random.uniform(kb, (1, fan_out), jnp.float32, -bound, bound)
        return w, b

    keys = jax.random.split(key, 7)
    w1, b1 = linear(keys[0], input_dim, hidden_dim)          # encoder.0
    w2, b2 = linear(keys[1], hidden_dim, hidden_dim)         # encoder.3
    w3, b3 = linear(keys[2], hidden_dim, output_dim)         # encoder.6
    wc1, bc1 = linear(keys[3], output_dim, hidden_dim // 2)  # classifier.0
    wc2, bc2 = linear(keys[4], hidden_dim // 2, 10)          # classifier.2
    wv1, bv1 = linear(keys[5], output_dim, hidden_dim // 2)  # value.0
    wv2, bv2 = linear(keys[6], hidden_dim // 2, 1)           # value.2
    return (w1, b1, w2, b2, w3, b3, wc1, bc1, wc2, bc2, wv1, bv1, wv2, bv2)


# ----------------------------- reference --------------------------------------
def _reference_bf16(x, params):
    """Pure-JAX reference of the module forward with the same bf16-operand /
    f32-accumulation numerics as the kernel (dropout = identity at eval).
    NOTE: bf16 operands are an accepted precision change vs a pure-f32
    PyTorch forward (~1e-2 level)."""
    (w1, b1, w2, b2, w3, b3, wc1, bc1, wc2, bc2, wv1, bv1, wv2, bv2) = params
    cdt = _COMPUTE_DTYPE

    def mm(a, w):
        return jnp.dot(a.astype(cdt), w.astype(cdt),
                       preferred_element_type=jnp.float32)

    h = jnp.maximum(mm(x, w1) + b1, 0.0)
    h = jnp.maximum(mm(h, w2) + b2, 0.0)
    enc = mm(h, w3) + b3
    c = jnp.maximum(mm(enc, wc1) + bc1, 0.0)
    logits = mm(c, wc2) + bc2
    v = jnp.maximum(mm(enc, wv1) + bv1, 0.0)
    value = mm(v, wv2) + bv2
    return enc, logits, value


# ----------------------------- main -------------------------------------------
if __name__ == "__main__":
    key = jax.random.PRNGKey(0)
    k_x, k_p = jax.random.split(key)

    # Small batch at the module's default (128-aligned) dims.
    B, INPUT_DIM, HIDDEN_DIM, OUTPUT_DIM = 16, 512, 256, 128
    x = jax.random.normal(k_x, (B, INPUT_DIM), jnp.float32)
    params = init_params(k_p, INPUT_DIM, HIDDEN_DIM, OUTPUT_DIM)

    packed = pack_params(params)   # one-time packing / bf16 casts (not per call)
    encoded, pattern_logits, value = neural_pattern_recognizer(x, packed)
    jax.block_until_ready((encoded, pattern_logits, value))

    # sanity check against a pure-JAX reference with matching numerics
    ref_enc, ref_logits, ref_value = _reference_bf16(x, params)
    assert encoded.shape == (B, OUTPUT_DIM)
    assert pattern_logits.shape == (B, 10)
    assert value.shape == (B, 1)
    assert jnp.allclose(encoded, ref_enc, atol=2e-2, rtol=2e-2)
    assert jnp.allclose(pattern_logits, ref_logits, atol=2e-2, rtol=2e-2)
    assert jnp.allclose(value, ref_value, atol=2e-2, rtol=2e-2)

    print("KERNEL_OK")
</pallas_src>

<mosaic_0001>
module attributes {stable_mosaic.version = 11 : i64} {
  func.func @_probe_kernel(%arg0: i32, %arg1: memref<8x128xf32, #tpu.memory_space<vmem>>, %arg2: memref<8x128xf32, #tpu.memory_space<vmem>>) attributes {dimension_semantics = [#tpu.dimension_semantics<arbitrary>], iteration_bounds = array<i64: 1>, scalar_prefetch = 0 : i64, scratch_operands = 0 : i64, tpu.core_type = #tpu.core_type<tc>, window_params = [{pipeline_mode = #tpu.pipeline_mode<synchronous>, transform_indices = @transform_0, window_bounds = array<i64: 8, 128>}, {pipeline_mode = #tpu.pipeline_mode<synchronous>, transform_indices = @transform_1, window_bounds = array<i64: 8, 128>}]} {
    %c0 = arith.constant 0 : index
    %c0_0 = arith.constant 0 : index
    %0 = vector.load %arg1[%c0, %c0_0] : memref<8x128xf32, #tpu.memory_space<vmem>>, vector<8x128xf32>
    %c0_1 = arith.constant 0 : index
    %c0_2 = arith.constant 0 : index
    %1 = vector.load %arg2[%c0_1, %c0_2] : memref<8x128xf32, #tpu.memory_space<vmem>>, vector<8x128xf32>
    tpu.vector_store %arg2[%c0_1, %c0_2], %0 {strides = array<i32>} : memref<8x128xf32, #tpu.memory_space<vmem>>, vector<8x128xf32>,
    return
  }
  func.func @transform_0(%arg0: i32) -> (i32, i32) {
    %c0_i32 = arith.constant 0 : i32
    %c0_i32_0 = arith.constant 0 : i32
    %c0_i32_1 = arith.constant 0 : i32
    return %c0_i32, %c0_i32_0 : i32, i32
  }
  func.func @transform_1(%arg0: i32) -> (i32, i32) {
    %c0_i32 = arith.constant 0 : i32
    %c0_i32_0 = arith.constant 0 : i32
    %c0_i32_1 = arith.constant 0 : i32
    return %c0_i32, %c0_i32_0 : i32, i32
  }
}

module attributes {stable_mosaic.version = 11 : i64} {
  func.func @_npr_kernel(%arg0: i32, %arg1: memref<16x512xf32, #tpu.memory_space<vmem>>, %arg2: memref<512x256xbf16, #tpu.memory_space<vmem>>, %arg3: memref<1x256xf32, #tpu.memory_space<vmem>>, %arg4: memref<256x256xbf16, #tpu.memory_space<vmem>>, %arg5: memref<1x256xf32, #tpu.memory_space<vmem>>, %arg6: memref<256x128xbf16, #tpu.memory_space<vmem>>, %arg7: memref<1x128xf32, #tpu.memory_space<vmem>>, %arg8: memref<128x256xbf16, #tpu.memory_space<vmem>>, %arg9: memref<1x256xf32, #tpu.memory_space<vmem>>, %arg10: memref<256x128xbf16, #tpu.memory_space<vmem>>, %arg11: memref<1x128xf32, #tpu.memory_space<vmem>>, %arg12: memref<16x128xf32, #tpu.memory_space<vmem>>, %arg13: memref<16x128xf32, #tpu.memory_space<vmem>>) attributes {dimension_semantics = [#tpu.dimension_semantics<parallel>], iteration_bounds = array<i64: 1>, scalar_prefetch = 0 : i64, scratch_operands = 0 : i64, tpu.core_type = #tpu.core_type<tc>, window_params = [{transform_indices = @transform_0, window_bounds = array<i64: 16, 512>}, {pipeline_mode = #tpu.pipeline_mode<synchronous>, transform_indices = @transform_1, window_bounds = array<i64: 512, 256>}, {pipeline_mode = #tpu.pipeline_mode<synchronous>, transform_indices = @transform_2, window_bounds = array<i64: 1, 256>}, {pipeline_mode = #tpu.pipeline_mode<synchronous>, transform_indices = @transform_3, window_bounds = array<i64: 256, 256>}, {pipeline_mode = #tpu.pipeline_mode<synchronous>, transform_indices = @transform_4, window_bounds = array<i64: 1, 256>}, {pipeline_mode = #tpu.pipeline_mode<synchronous>, transform_indices = @transform_5, window_bounds = array<i64: 256, 128>}, {pipeline_mode = #tpu.pipeline_mode<synchronous>, transform_indices = @transform_6, window_bounds = array<i64: 1, 128>}, {pipeline_mode = #tpu.pipeline_mode<synchronous>, transform_indices = @transform_7, window_bounds = array<i64: 128, 256>}, {pipeline_mode = #tpu.pipeline_mode<synchronous>, transform_indices = @transform_8, window_bounds = array<i64: 1, 256>}, {pipeline_mode = #tpu.pipeline_mode<synchronous>, transform_indices = @transform_9, window_bounds = array<i64: 256, 128>}, {pipeline_mode = #tpu.pipeline_mode<synchronous>, transform_indices = @transform_10, window_bounds = array<i64: 1, 128>}, {transform_indices = @transform_11, window_bounds = array<i64: 16, 128>}, {transform_indices = @transform_12, window_bounds = array<i64: 16, 128>}]} {
    %c0 = arith.constant 0 : index
    %c0_0 = arith.constant 0 : index
    %0 = vector.load %arg1[%c0, %c0_0] : memref<16x512xf32, #tpu.memory_space<vmem>>, vector<16x512xf32>
    %1 = arith.truncf %0 : vector<16x512xf32> to vector<16x512xbf16>
    %c0_1 = arith.constant 0 : index
    %c0_2 = arith.constant 0 : index
    %2 = vector.load %arg2[%c0_1, %c0_2] : memref<512x256xbf16, #tpu.memory_space<vmem>>, vector<512x256xbf16>
    %cst = arith.constant dense<0.000000e+00> : vector<16x256xf32>
    %3 = tpu.matmul %1, %2, %cst {dimension_numbers = #tpu.dot_dimension_numbers<[1], [0], [0], [1], [0, 0, 1, 1], [], []>} : vector<16x512xbf16>, vector<512x256xbf16>, vector<16x256xf32> -> vector<16x256xf32>
    %c0_3 = arith.constant 0 : index
    %c0_4 = arith.constant 0 : index
    %4 = vector.load %arg3[%c0_3, %c0_4] : memref<1x256xf32, #tpu.memory_space<vmem>>, vector<1x256xf32>
    %5 = vector.broadcast %4 : vector<1x256xf32> to vector<16x256xf32>
    %6 = arith.addf %3, %5 : vector<16x256xf32>
    %cst_5 = arith.constant 0.000000e+00 : f32
    %7 = vector.broadcast %cst_5 : f32 to vector<16x256xf32>
    %8 = arith.maximumf %6, %7 : vector<16x256xf32>
    %9 = arith.truncf %8 : vector<16x256xf32> to vector<16x256xbf16>
    %c0_6 = arith.constant 0 : index
    %c0_7 = arith.constant 0 : index
    %10 = vector.load %arg4[%c0_6, %c0_7] : memref<256x256xbf16, #tpu.memory_space<vmem>>, vector<256x256xbf16>
    %cst_8 = arith.constant dense<0.000000e+00> : vector<16x256xf32>
    %11 = tpu.matmul %9, %10, %cst_8 {dimension_numbers = #tpu.dot_dimension_numbers<[1], [0], [0], [1], [0, 0, 1, 1], [], []>} : vector<16x256xbf16>, vector<256x256xbf16>, vector<16x256xf32> -> vector<16x256xf32>
    %c0_9 = arith.constant 0 : index
    %c0_10 = arith.constant 0 : index
    %12 = vector.load %arg5[%c0_9, %c0_10] : memref<1x256xf32, #tpu.memory_space<vmem>>, vector<1x256xf32>
    %13 = vector.broadcast %12 : vector<1x256xf32> to vector<16x256xf32>
    %14 = arith.addf %11, %13 : vector<16x256xf32>
    %cst_11 = arith.constant 0.000000e+00 : f32
    %15 = vector.broadcast %cst_11 : f32 to vector<16x256xf32>
    %16 = arith.maximumf %14, %15 : vector<16x256xf32>
    %17 = arith.truncf %16 : vector<16x256xf32> to vector<16x256xbf16>
    %c0_12 = arith.constant 0 : index
    %c0_13 = arith.constant 0 : index
    %18 = vector.load %arg6[%c0_12, %c0_13] : memref<256x128xbf16, #tpu.memory_space<vmem>>, vector<256x128xbf16>
    %cst_14 = arith.constant dense<0.000000e+00> : vector<16x128xf32>
    %19 = tpu.matmul %17, %18, %cst_14 {dimension_numbers = #tpu.dot_dimension_numbers<[1], [0], [0], [1], [0, 0, 1, 1], [], []>} : vector<16x256xbf16>, vector<256x128xbf16>, vector<16x128xf32> -> vector<16x128xf32>
    %c0_15 = arith.constant 0 : index
    %c0_16 = arith.constant 0 : index
    %20 = vector.load %arg7[%c0_15, %c0_16] : memref<1x128xf32, #tpu.memory_space<vmem>>, vector<1x128xf32>
    %21 = vector.broadcast %20 : vector<1x128xf32> to vector<16x128xf32>
    %22 = arith.addf %19, %21 : vector<16x128xf32>
    %c0_17 = arith.constant 0 : index
    %c0_18 = arith.constant 0 : index
    %23 = vector.load %arg12[%c0_17, %c0_18] : memref<16x128xf32, #tpu.memory_space<vmem>>, vector<16x128xf32>
    tpu.vector_store %arg12[%c0_17, %c0_18], %22 {strides = array<i32>} : memref<16x128xf32, #tpu.memory_space<vmem>>, vector<16x128xf32>,
    %24 = arith.truncf %22 : vector<16x128xf32> to vector<16x128xbf16>
    %c0_19 = arith.constant 0 : index
    %c0_20 = arith.constant 0 : index
    %25 = vector.load %arg8[%c0_19, %c0_20] : memref<128x256xbf16, #tpu.memory_space<vmem>>, vector<128x256xbf16>
    %cst_21 = arith.constant dense<0.000000e+00> : vector<16x256xf32>
    %26 = tpu.matmul %24, %25, %cst_21 {dimension_numbers = #tpu.dot_dimension_numbers<[1], [0], [0], [1], [0, 0, 1, 1], [], []>} : vector<16x128xbf16>, vector<128x256xbf16>, vector<16x256xf32> -> vector<16x256xf32>
    %c0_22 = arith.constant 0 : index
    %c0_23 = arith.constant 0 : index
    %27 = vector.load %arg9[%c0_22, %c0_23] : memref<1x256xf32, #tpu.memory_space<vmem>>, vector<1x256xf32>
    %28 = vector.broadcast %27 : vector<1x256xf32> to vector<16x256xf32>
    %29 = arith.addf %26, %28 : vector<16x256xf32>
    %cst_24 = arith.constant 0.000000e+00 : f32
    %30 = vector.broadcast %cst_24 : f32 to vector<16x256xf32>
    %31 = arith.maximumf %29, %30 : vector<16x256xf32>
    %32 = arith.truncf %31 : vector<16x256xf32> to vector<16x256xbf16>
    %c0_25 = arith.constant 0 : index
    %c0_26 = arith.constant 0 : index
    %33 = vector.load %arg10[%c0_25, %c0_26] : memref<256x128xbf16, #tpu.memory_space<vmem>>, vector<256x128xbf16>
    %cst_27 = arith.constant dense<0.000000e+00> : vector<16x128xf32>
    %34 = tpu.matmul %32, %33, %cst_27 {dimension_numbers = #tpu.dot_dimension_numbers<[1], [0], [0], [1], [0, 0, 1, 1], [], []>} : vector<16x256xbf16>, vector<256x128xbf16>, vector<16x128xf32> -> vector<16x128xf32>
    %c0_28 = arith.constant 0 : index
    %c0_29 = arith.constant 0 : index
    %35 = vector.load %arg11[%c0_28, %c0_29] : memref<1x128xf32, #tpu.memory_space<vmem>>, vector<1x128xf32>
    %36 = vector.broadcast %35 : vector<1x128xf32> to vector<16x128xf32>
    %37 = arith.addf %34, %36 : vector<16x128xf32>
    %c0_30 = arith.constant 0 : index
    %c0_31 = arith.constant 0 : index
    %38 = vector.load %arg13[%c0_30, %c0_31] : memref<16x128xf32, #tpu.memory_space<vmem>>, vector<16x128xf32>
    tpu.vector_store %arg13[%c0_30, %c0_31], %37 {strides = array<i32>} : memref<16x128xf32, #tpu.memory_space<vmem>>, vector<16x128xf32>,
    return
  }
  func.func @transform_0(%arg0: i32) -> (i32, i32) {
    %c0_i32 = arith.constant 0 : i32
    %c0_i32_0 = arith.constant 0 : i32
    return %arg0, %c0_i32 : i32, i32
  }
  func.func @transform_1(%arg0: i32) -> (i32, i32) {
    %c0_i32 = arith.constant 0 : i32
    %c0_i32_0 = arith.constant 0 : i32
    %c0_i32_1 = arith.constant 0 : i32
    return %c0_i32, %c0_i32_0 : i32, i32
  }
  func.func @transform_2(%arg0: i32) -> (i32, i32) {
    %c0_i32 = arith.constant 0 : i32
    %c0_i32_0 = arith.constant 0 : i32
    %c0_i32_1 = arith.constant 0 : i32
    return %c0_i32, %c0_i32_0 : i32, i32
  }
  func.func @transform_3(%arg0: i32) -> (i32, i32) {
    %c0_i32 = arith.constant 0 : i32
    %c0_i32_0 = arith.constant 0 : i32
    %c0_i32_1 = arith.constant 0 : i32
    return %c0_i32, %c0_i32_0 : i32, i32
  }
  func.func @transform_4(%arg0: i32) -> (i32, i32) {
    %c0_i32 = arith.constant 0 : i32
    %c0_i32_0 = arith.constant 0 : i32
    %c0_i32_1 = arith.constant 0 : i32
    return %c0_i32, %c0_i32_0 : i32, i32
  }
  func.func @transform_5(%arg0: i32) -> (i32, i32) {
    %c0_i32 = arith.constant 0 : i32
    %c0_i32_0 = arith.constant 0 : i32
    %c0_i32_1 = arith.constant 0 : i32
    return %c0_i32, %c0_i32_0 : i32, i32
  }
  func.func @transform_6(%arg0: i32) -> (i32, i32) {
    %c0_i32 = arith.constant 0 : i32
    %c0_i32_0 = arith.constant 0 : i32
    %c0_i32_1 = arith.constant 0 : i32
    return %c0_i32, %c0_i32_0 : i32, i32
  }
  func.func @transform_7(%arg0: i32) -> (i32, i32) {
    %c0_i32 = arith.constant 0 : i32
    %c0_i32_0 = arith.constant 0 : i32
    %c0_i32_1 = arith.constant 0 : i32
    return %c0_i32, %c0_i32_0 : i32, i32
  }
  func.func @transform_8(%arg0: i32) -> (i32, i32) {
    %c0_i32 = arith.constant 0 : i32
    %c0_i32_0 = arith.constant 0 : i32
    %c0_i32_1 = arith.constant 0 : i32
    return %c0_i32, %c0_i32_0 : i32, i32
  }
  func.func @transform_9(%arg0: i32) -> (i32, i32) {
    %c0_i32 = arith.constant 0 : i32
    %c0_i32_0 = arith.constant 0 : i32
    %c0_i32_1 = arith.constant 0 : i32
    return %c0_i32, %c0_i32_0 : i32, i32
  }
  func.func @transform_10(%arg0: i32) -> (i32, i32) {
    %c0_i32 = arith.constant 0 : i32
    %c0_i32_0 = arith.constant 0 : i32
    %c0_i32_1 = arith.constant 0 : i32
    return %c0_i32, %c0_i32_0 : i32, i32
  }
  func.func @transform_11(%arg0: i32) -> (i32, i32) {
    %c0_i32 = arith.constant 0 : i32
    %c0_i32_0 = arith.constant 0 : i32
    return %arg0, %c0_i32 : i32, i32
  }
  func.func @transform_12(%arg0: i32) -> (i32, i32) {
    %c0_i32 = arith.constant 0 : i32
    %c0_i32_0 = arith.constant 0 : i32
    return %arg0, %c0_i32 : i32, i32
  }
}

</mosaic_0001>

<llo_original>
// kernel: tpu_custom_call.1
$region0: #{tpu_custom_call.1}
  #allocation0 [shape = 'u32[]', space=smem, size = 0x4, offset = 0x4, fixed_abs, tag = 'smem constant byte address 0x4 - core index']
  #allocation1 [shape = 'u32[144,128]{1,0:T(1,128)}', space=vmem, size = 0x12000, scoped, tag = 'internal scratch']
  %s0 = inlined_call_operand.hbm [shape: f32[8,128], index: 0, kind: input, shape index: {}]
  %s1 = inlined_call_operand.hbm [shape: f32[8,128], index: 1, kind: output, shape index: {}]
  %s2 = sld [smem:[#allocation0]]
  $region18: #{tpu_custom_call.1} parent=0
    _
  %s4 = ssub.s32 1, %s2
  %s5 = scalar_select 0, %s4, %s2
  $region1: #{tpu_custom_call.1} parent=0
    #allocation2 [shape = 'u8[4096]{0}', space=vmem, size = 0x1000, scoped, tag = 'input window, operand 0, single buffered']
    #allocation3 [shape = 's32[1]{0}', space=sflag, size = 0x4, scoped, tag = 'scoped memory for tpu_custom_call.1']
    #allocation4 [shape = 's32[1]{0}', space=sflag, size = 0x4, scoped, tag = 'scoped memory for tpu_custom_call.1']
    #allocation5 [shape = 'u8[4096]{0}', space=vmem, size = 0x1000, scoped, tag = 'output window, operand 0, single buffered']
    %6 = vsyncpa [#allocation3], 0
    %7 = vsyncpa [#allocation4], 0
    // Predicated region
    $region2: #{tpu_custom_call.1} parent=1 // pred_check
      _
    $region3: #{tpu_custom_call.1} parent=1 // pred_check_branch
      %9 = sbr.rel (0) target = $region5
    $region4: #{tpu_custom_call.1} parent=1 // pred_region
      %s11 = ssub.s32 128, 128
      %12 = vsyncadd [#allocation3], %s11
      %s14 = sshll.u32 [#allocation2], 4
      %s15 = int_to_ptr.vmem [resolvable:$true] %s14
      %17 = dma.hbm_to_vmem [thread:$0]  %s0, 128, %s15, [#allocation3]
    $region5: #{tpu_custom_call.1} parent=1 // pred_fallthru
      _
    // Predicated region
    $region6: #{tpu_custom_call.1} parent=1 // pred_check
      _
    $region7: #{tpu_custom_call.1} parent=1 // pred_check_branch
      %19 = sbr.rel (0) target = $region9
    $region8: #{tpu_custom_call.1} parent=1 // pred_region
      %20 = dma.done [#allocation3], 128
    $region9: #{tpu_custom_call.1} parent=1 // pred_fallthru
      _
    %v21 = vld [vmem:[#allocation2] sm:$0xff]
    %22 = vst [vmem:[#allocation5] sm:$0xff] %v21
    // Predicated region
    $region10: #{tpu_custom_call.1} parent=1 // pred_check
      _
    $region11: #{tpu_custom_call.1} parent=1 // pred_check_branch
      %24 = sbr.rel (0) target = $region13
    $region12: #{tpu_custom_call.1} parent=1 // pred_region
      %s26 = ssub.s32 128, 128
      %27 = vsyncadd [#allocation4], %s26
      %s29 = sshll.u32 [#allocation5], 4
      %s30 = int_to_ptr.vmem [resolvable:$true] %s29
      %32 = dma.vmem_to_hbm [thread:$0]  %s30, 128, %s1, [#allocation4]
    $region13: #{tpu_custom_call.1} parent=1 // pred_fallthru
      _
    // Predicated region
    $region14: #{tpu_custom_call.1} parent=1 // pred_check
      _
    $region15: #{tpu_custom_call.1} parent=1 // pred_check_branch
      %34 = sbr.rel (0) target = $region17
    $region16: #{tpu_custom_call.1} parent=1 // pred_region
      %35 = dma.done [#allocation4], 128
    $region17: #{tpu_custom_call.1} parent=1 // pred_fallthru
      _
    %36 = vsyncpa [#allocation3], 1
    %37 = vsyncpa [#allocation4], 1

// kernel: _forward.1
$region0: #{_forward.1}
  #allocation0 [shape = 'u32[]', space=smem, size = 0x4, offset = 0x4, fixed_abs, tag = 'smem constant byte address 0x4 - core index']
  #allocation1 [shape = 'u32[144,128]{1,0:T(1,128)}', space=vmem, size = 0x12000, scoped, tag = 'internal scratch']
  %s0 = inlined_call_operand.hbm [shape: f32[16,512], index: 0, kind: input, shape index: {}]
  %s1 = inlined_call_operand.hbm [shape: bf16[512,256], index: 1, kind: input, shape index: {}]
  %s2 = inlined_call_operand.vmem [shape: f32[1,256], index: 2, kind: input, shape index: {}]
  %s3 = inlined_call_operand.hbm [shape: bf16[256,256], index: 3, kind: input, shape index: {}]
  %s4 = inlined_call_operand.vmem [shape: f32[1,256], index: 4, kind: input, shape index: {}]
  %s5 = inlined_call_operand.hbm [shape: bf16[256,128], index: 5, kind: input, shape index: {}]
  %s6 = inlined_call_operand.vmem [shape: f32[1,128], index: 6, kind: input, shape index: {}]
  %s7 = inlined_call_operand.hbm [shape: bf16[128,256], index: 7, kind: input, shape index: {}]
  %s8 = inlined_call_operand.vmem [shape: f32[1,256], index: 8, kind: input, shape index: {}]
  %s9 = inlined_call_operand.hbm [shape: bf16[256,128], index: 9, kind: input, shape index: {}]
  %s10 = inlined_call_operand.vmem [shape: f32[1,128], index: 10, kind: input, shape index: {}]
  %s11 = inlined_call_operand.hbm [shape: f32[16,128], index: 11, kind: output, shape index: {0}]
  %s12 = inlined_call_operand.vmem [shape: f32[16,128], index: 12, kind: output, shape index: {1}]
  %13 = xla_tuple %s11, %s12
  %s14 = sld [smem:[#allocation0]]
  $region86: #{_forward.1} parent=0
    _
  %s16 = ssub.s32 1, %s14
  %s17 = scalar_select 0, %s16, %s14
  $region1: #{_forward.1} parent=0
    #allocation2 [shape = 'u8[32768]{0}', space=vmem, size = 0x8000, scoped, tag = 'input window, operand 0, single buffered']
    #allocation3 [shape = 's32[1]{0}', space=sflag, size = 0x4, scoped, tag = 'scoped memory for _forward.1']
    #allocation4 [shape = 's32[1]{0}', space=sflag, size = 0x4, scoped, tag = 'scoped memory for _forward.1']
    #allocation5 [shape = 'u8[262144]{0}', space=vmem, size = 0x40000, scoped, tag = 'input window, operand 1, single buffered']
    #allocation6 [shape = 's32[1]{0}', space=sflag, size = 0x4, scoped, tag = 'scoped memory for _forward.1']
    #allocation7 [shape = 'u8[131072]{0}', space=vmem, size = 0x20000, scoped, tag = 'input window, operand 3, single buffered']
    #allocation8 [shape = 'u8[65536]{0}', space=vmem, size = 0x10000, scoped, tag = 'input window, operand 5, single buffered']
    #allocation9 [shape = 's32[1]{0}', space=sflag, size = 0x4, scoped, tag = 'scoped memory for _forward.1']
    #allocation10 [shape = 'u8[65536]{0}', space=vmem, size = 0x10000, scoped, tag = 'input window, operand 7, single buffered']
    #allocation11 [shape = 'u8[65536]{0}', space=vmem, size = 0x10000, scoped, tag = 'input window, operand 9, single buffered']
    #allocation12 [shape = 's32[1]{0}', space=sflag, size = 0x4, scoped, tag = 'scoped memory for _forward.1']
    #allocation13 [shape = 'u8[8192]{0}', space=vmem, size = 0x2000, scoped, tag = 'output window, operand 0, single buffered']
    %18 = vsyncpa [#allocation3], 0
    %19 = vsyncpa [#allocation6], 0
    %20 = vsyncpa [#allocation9], 0
    %21 = vsyncpa [#allocation12], 0
    %22 = vsyncpa [#allocation4], 0
    // Predicated region
    $region2: #{_forward.1} parent=1 // pred_check
      _
    $region3: #{_forward.1} parent=1 // pred_check_branch
      %24 = sbr.rel (0) target = $region5
    $region4: #{_forward.1} parent=1 // pred_region
      %s26 = ssub.s32 1024, 1024
      %27 = vsyncadd [#allocation3], %s26
      %s28 = sshll.u32 [#allocation2], 4
      %s29 = int_to_ptr.vmem [resolvable:$true] %s28
      %34 = dma.hbm_to_vmem [thread:$0]  %s0, 1024, %s29, [#allocation3], 512, 512, 32
    $region5: #{_forward.1} parent=1 // pred_fallthru
      _
    // Predicated region
    $region6: #{_forward.1} parent=1 // pred_check
      _
    $region7: #{_forward.1} parent=1 // pred_check_branch
      %36 = sbr.rel (0) target = $region9
    $region8: #{_forward.1} parent=1 // pred_region
      %s38 = ssub.s32 8192, 8192
      %39 = vsyncadd [#allocation6], %s38
      %s40 = sshll.u32 [#allocation5], 4
      %s41 = int_to_ptr.vmem [resolvable:$true] %s40
      %46 = dma.hbm_to_vmem [thread:$0]  %s1, 8192, %s41, [#allocation6], 128, 128, 8
    $region9: #{_forward.1} parent=1 // pred_fallthru
      _
    // Predicated region
    $region10: #{_forward.1} parent=1 // pred_check
      _
    $region11: #{_forward.1} parent=1 // pred_check_branch
      %48 = sbr.rel (0) target = $region13
    $region12: #{_forward.1} parent=1 // pred_region
      _
    $region13: #{_forward.1} parent=1 // pred_fallthru
      _
    // Predicated region
    $region14: #{_forward.1} parent=1 // pred_check
      _
    $region15: #{_forward.1} parent=1 // pred_check_branch
      %50 = sbr.rel (0) target = $region17
    $region16: #{_forward.1} parent=1 // pred_region
      %s52 = ssub.s32 4096, 4096
      %53 = vsyncadd [#allocation6], %s52
      %s54 = sshll.u32 [#allocation7], 4
      %s55 = int_to_ptr.vmem [resolvable:$true] %s54
      %60 = dma.hbm_to_vmem [thread:$0]  %s3, 4096, %s55, [#allocation6], 128, 128, 8
    $region17: #{_forward.1} parent=1 // pred_fallthru
      _
    // Predicated region
    $region18: #{_forward.1} parent=1 // pred_check
      _
    $region19: #{_forward.1} parent=1 // pred_check_branch
      %62 = sbr.rel (0) target = $region21
    $region20: #{_forward.1} parent=1 // pred_region
      _
    $region21: #{_forward.1} parent=1 // pred_fallthru
      _
    // Predicated region
    $region22: #{_forward.1} parent=1 // pred_check
      _
    $region23: #{_forward.1} parent=1 // pred_check_branch
      %64 = sbr.rel (0) target = $region25
    $region24: #{_forward.1} parent=1 // pred_region
      %s66 = ssub.s32 2048, 2048
      %67 = vsyncadd [#allocation9], %s66
      %s68 = sshll.u32 [#allocation8], 4
      %s69 = int_to_ptr.vmem [resolvable:$true] %s68
      %74 = dma.hbm_to_vmem [thread:$0]  %s5, 2048, %s69, [#allocation9], 64, 64, 4
    $region25: #{_forward.1} parent=1 // pred_fallthru
      _
    // Predicated region
    $region26: #{_forward.1} parent=1 // pred_check
      _
    $region27: #{_forward.1} parent=1 // pred_check_branch
      %76 = sbr.rel (0) target = $region29
    $region28: #{_forward.1} parent=1 // pred_region
      _
    $region29: #{_forward.1} parent=1 // pred_fallthru
      _
    // Predicated region
    $region30: #{_forward.1} parent=1 // pred_check
      _
    $region31: #{_forward.1} parent=1 // pred_check_branch
      %78 = sbr.rel (0) target = $region33
    $region32: #{_forward.1} parent=1 // pred_region
      %s80 = ssub.s32 2048, 2048
      %81 = vsyncadd [#allocation9], %s80
      %s82 = sshll.u32 [#allocation10], 4
      %s83 = int_to_ptr.vmem [resolvable:$true] %s82
      %88 = dma.hbm_to_vmem [thread:$0]  %s7, 2048, %s83, [#allocation9], 128, 128, 8
    $region33: #{_forward.1} parent=1 // pred_fallthru
      _
    // Predicated region
    $region34: #{_forward.1} parent=1 // pred_check
      _
    $region35: #{_forward.1} parent=1 // pred_check_branch
      %90 = sbr.rel (0) target = $region37
    $region36: #{_forward.1} parent=1 // pred_region
      _
    $region37: #{_forward.1} parent=1 // pred_fallthru
      _
    // Predicated region
    $region38: #{_forward.1} parent=1 // pred_check
      _
    $region39: #{_forward.1} parent=1 // pred_check_branch
      %92 = sbr.rel (0) target = $region41
    $region40: #{_forward.1} parent=1 // pred_region
      %s94 = ssub.s32 2048, 2048
      %95 = vsyncadd [#allocation12], %s94
      %s96 = sshll.u32 [#allocation11], 4
      %s97 = int_to_ptr.vmem [resolvable:$true] %s96
      %102 = dma.hbm_to_vmem [thread:$0]  %s9, 2048, %s97, [#allocation12], 64, 64, 4
    $region41: #{_forward.1} parent=1 // pred_fallthru
      _
    // Predicated region
    $region42: #{_forward.1} parent=1 // pred_check
      _
    $region43: #{_forward.1} parent=1 // pred_check_branch
      %104 = sbr.rel (0) target = $region45
    $region44: #{_forward.1} parent=1 // pred_region
      _
    $region45: #{_forward.1} parent=1 // pred_fallthru
      _
    // Predicated region
    $region46: #{_forward.1} parent=1 // pred_check
      _
    $region47: #{_forward.1} parent=1 // pred_check_branch
      %106 = sbr.rel (0) target = $region49
    $region48: #{_forward.1} parent=1 // pred_region
      %107 = dma.done [#allocation3], 1024
    $region49: #{_forward.1} parent=1 // pred_fallthru
      _
    // Predicated region
    $region50: #{_forward.1} parent=1 // pred_check
      _
    $region51: #{_forward.1} parent=1 // pred_check_branch
      %109 = sbr.rel (0) target = $region53
    $region52: #{_forward.1} parent=1 // pred_region
      %110 = dma.done [#allocation6], 8192
    $region53: #{_forward.1} parent=1 // pred_fallthru
      _
    // Predicated region
    $region54: #{_forward.1} parent=1 // pred_check
      _
    $region55: #{_forward.1} parent=1 // pred_check_branch
      %112 = sbr.rel (0) target = $region57
    $region56: #{_forward.1} parent=1 // pred_region
      %113 = dma.done [#allocation6], 4096
    $region57: #{_forward.1} parent=1 // pred_fallthru
      _
    // Predicated region
    $region58: #{_forward.1} parent=1 // pred_check
      _
    $region59: #{_forward.1} parent=1 // pred_check_branch
      %115 = sbr.rel (0) target = $region61
    $region60: #{_forward.1} parent=1 // pred_region
      %116 = dma.done [#allocation9], 2048
    $region61: #{_forward.1} parent=1 // pred_fallthru
      _
    // Predicated region
    $region62: #{_forward.1} parent=1 // pred_check
      _
    $region63: #{_forward.1} parent=1 // pred_check_branch
      %118 = sbr.rel (0) target = $region65
    $region64: #{_forward.1} parent=1 // pred_region
      %119 = dma.done [#allocation9], 2048
    $region65: #{_forward.1} parent=1 // pred_fallthru
      _
    // Predicated region
    $region66: #{_forward.1} parent=1 // pred_check
      _
    $region67: #{_forward.1} parent=1 // pred_check_branch
      %121 = sbr.rel (0) target = $region69
    $region68: #{_forward.1} parent=1 // pred_region
      %122 = dma.done [#allocation12], 2048
    $region69: #{_forward.1} parent=1 // pred_fallthru
      _
    %v124 = vld [vmem:[#allocation2] sm:$0xff]
    %v125 = vld [vmem:[#allocation2 + $0x8] sm:$0xff]
    %v126 = vld [vmem:[#allocation2 + $0x10] sm:$0xff]
    %v127 = vld [vmem:[#allocation2 + $0x18] sm:$0xff]
    %v128 = vld [vmem:[#allocation2 + $0x20] sm:$0xff]
    %v129 = vld [vmem:[#allocation2 + $0x28] sm:$0xff]
    %v130 = vld [vmem:[#allocation2 + $0x30] sm:$0xff]
    %v131 = vld [vmem:[#allocation2 + $0x38] sm:$0xff]
    %v132 = vpack.c.bf16 %v128, %v124
    %v133 = vpack.c.bf16 %v129, %v125
    %v134 = vpack.c.bf16 %v130, %v126
    %v135 = vpack.c.bf16 %v131, %v127
    %v136 = vld [vmem:[#allocation5] sm:$0xff]
    %v137 = vld [vmem:[#allocation5 + $0x8] sm:$0xff]
    %v138 = vld [vmem:[#allocation5 + $0x10] sm:$0xff]
    %v139 = vld [vmem:[#allocation5 + $0x18] sm:$0xff]
    %v140 = vld [vmem:[#allocation5 + $0x20] sm:$0xff]
    %v141 = vld [vmem:[#allocation5 + $0x28] sm:$0xff]
    %v142 = vld [vmem:[#allocation5 + $0x30] sm:$0xff]
    %v143 = vld [vmem:[#allocation5 + $0x38] sm:$0xff]
    %v144 = vld [vmem:[#allocation5 + $0x40] sm:$0xff]
    %v145 = vld [vmem:[#allocation5 + $0x48] sm:$0xff]
    %v146 = vld [vmem:[#allocation5 + $0x50] sm:$0xff]
    %v147 = vld [vmem:[#allocation5 + $0x58] sm:$0xff]
    %v148 = vld [vmem:[#allocation5 + $0x60] sm:$0xff]
    %v149 = vld [vmem:[#allocation5 + $0x68] sm:$0xff]
    %v150 = vld [vmem:[#allocation5 + $0x70] sm:$0xff]
    %v151 = vld [vmem:[#allocation5 + $0x78] sm:$0xff]
    %v152 = vld [vmem:[#allocation5 + $0x80] sm:$0xff]
    %v153 = vld [vmem:[#allocation5 + $0x88] sm:$0xff]
    %v154 = vld [vmem:[#allocation5 + $0x90] sm:$0xff]
    %v155 = vld [vmem:[#allocation5 + $0x98] sm:$0xff]
    %v156 = vld [vmem:[#allocation5 + $0xa0] sm:$0xff]
    %v157 = vld [vmem:[#allocation5 + $0xa8] sm:$0xff]
    %v158 = vld [vmem:[#allocation5 + $0xb0] sm:$0xff]
    %v159 = vld [vmem:[#allocation5 + $0xb8] sm:$0xff]
    %v160 = vld [vmem:[#allocation5 + $0xc0] sm:$0xff]
    %v161 = vld [vmem:[#allocation5 + $0xc8] sm:$0xff]
    %v162 = vld [vmem:[#allocation5 + $0xd0] sm:$0xff]
    %v163 = vld [vmem:[#allocation5 + $0xd8] sm:$0xff]
    %v164 = vld [vmem:[#allocation5 + $0xe0] sm:$0xff]
    %v165 = vld [vmem:[#allocation5 + $0xe8] sm:$0xff]
    %v166 = vld [vmem:[#allocation5 + $0xf0] sm:$0xff]
    %v167 = vld [vmem:[#allocation5 + $0xf8] sm:$0xff]
    %v168 = vld [vmem:[#allocation5 + $0x100] sm:$0xff]
    %v169 = vld [vmem:[#allocation5 + $0x108] sm:$0xff]
    %v170 = vld [vmem:[#allocation5 + $0x110] sm:$0xff]
    %v171 = vld [vmem:[#allocation5 + $0x118] sm:$0xff]
    %v172 = vld [vmem:[#allocation5 + $0x120] sm:$0xff]
    %v173 = vld [vmem:[#allocation5 + $0x128] sm:$0xff]
    %v174 = vld [vmem:[#allocation5 + $0x130] sm:$0xff]
    %v175 = vld [vmem:[#allocation5 + $0x138] sm:$0xff]
    %v176 = vld [vmem:[#allocation5 + $0x140] sm:$0xff]
    %v177 = vld [vmem:[#allocation5 + $0x148] sm:$0xff]
    %v178 = vld [vmem:[#allocation5 + $0x150] sm:$0xff]
    %v179 = vld [vmem:[#allocation5 + $0x158] sm:$0xff]
    %v180 = vld [vmem:[#allocation5 + $0x160] sm:$0xff]
    %v181 = vld [vmem:[#allocation5 + $0x168] sm:$0xff]
    %v182 = vld [vmem:[#allocation5 + $0x170] sm:$0xff]
    %v183 = vld [vmem:[#allocation5 + $0x178] sm:$0xff]
    %v184 = vld [vmem:[#allocation5 + $0x180] sm:$0xff]
    %v185 = vld [vmem:[#allocation5 + $0x188] sm:$0xff]
    %v186 = vld [vmem:[#allocation5 + $0x190] sm:$0xff]
    %v187 = vld [vmem:[#allocation5 + $0x198] sm:$0xff]
    %v188 = vld [vmem:[#allocation5 + $0x1a0] sm:$0xff]
    %v189 = vld [vmem:[#allocation5 + $0x1a8] sm:$0xff]
    %v190 = vld [vmem:[#allocation5 + $0x1b0] sm:$0xff]
    %v191 = vld [vmem:[#allocation5 + $0x1b8] sm:$0xff]
    %v192 = vld [vmem:[#allocation5 + $0x1c0] sm:$0xff]
    %v193 = vld [vmem:[#allocation5 + $0x1c8] sm:$0xff]
    %v194 = vld [vmem:[#allocation5 + $0x1d0] sm:$0xff]
    %v195 = vld [vmem:[#allocation5 + $0x1d8] sm:$0xff]
    %v196 = vld [vmem:[#allocation5 + $0x1e0] sm:$0xff]
    %v197 = vld [vmem:[#allocation5 + $0x1e8] sm:$0xff]
    %v198 = vld [vmem:[#allocation5 + $0x1f0] sm:$0xff]
    %v199 = vld [vmem:[#allocation5 + $0x1f8] sm:$0xff]
    %v200 = vld [vmem:[%s2] sm:$0x3]
    %v202 = vlaneseq
    %v203 = vshrl.u32 %v202, 7
    %v204 = vsub.s32 0, %v203
    %v205 = vrot.slane %v200, %v204
    %v206 = vlaneseq
    %v207 = vshrl.u32 %v206, 7
    %v208 = vsub.s32 1, %v207
    %v209 = vrot.slane %v200, %v208
    %v276 = vunpack.c.l.b16 %v136
    %v277 = vunpack.c.h.b16 %v136
    %v278 = vunpack.c.l.b16 %v137
    %v279 = vunpack.c.h.b16 %v137
    %v280 = vunpack.c.l.b16 %v138
    %v281 = vunpack.c.h.b16 %v138
    %v282 = vunpack.c.l.b16 %v139
    %v283 = vunpack.c.h.b16 %v139
    %v284 = vunpack.c.l.b16 %v140
    %v285 = vunpack.c.h.b16 %v140
    %v286 = vunpack.c.l.b16 %v141
    %v287 = vunpack.c.h.b16 %v141
    %v288 = vunpack.c.l.b16 %v142
    %v289 = vunpack.c.h.b16 %v142
    %v290 = vunpack.c.l.b16 %v143
    %v291 = vunpack.c.h.b16 %v143
    %v292 = vunpack.c.l.b16 %v144
    %v293 = vunpack.c.h.b16 %v144
    %v294 = vunpack.c.l.b16 %v145
    %v295 = vunpack.c.h.b16 %v145
    %v296 = vunpack.c.l.b16 %v146
    %v297 = vunpack.c.h.b16 %v146
    %v298 = vunpack.c.l.b16 %v147
    %v299 = vunpack.c.h.b16 %v147
    %v300 = vunpack.c.l.b16 %v148
    %v301 = vunpack.c.h.b16 %v148
    %v302 = vunpack.c.l.b16 %v149
    %v303 = vunpack.c.h.b16 %v149
    %v304 = vunpack.c.l.b16 %v150
    %v305 = vunpack.c.h.b16 %v150
    %v306 = vunpack.c.l.b16 %v151
    %v307 = vunpack.c.h.b16 %v151
    %v308 = vunpack.c.l.b16 %v152
    %v309 = vunpack.c.h.b16 %v152
    %v310 = vunpack.c.l.b16 %v153
    %v311 = vunpack.c.h.b16 %v153
    %v312 = vunpack.c.l.b16 %v154
    %v313 = vunpack.c.h.b16 %v154
    %v314 = vunpack.c.l.b16 %v155
    %v315 = vunpack.c.h.b16 %v155
    %v316 = vunpack.c.l.b16 %v156
    %v317 = vunpack.c.h.b16 %v156
    %v318 = vunpack.c.l.b16 %v157
    %v319 = vunpack.c.h.b16 %v157
    %v320 = vunpack.c.l.b16 %v158
    %v321 = vunpack.c.h.b16 %v158
    %v322 = vunpack.c.l.b16 %v159
    %v323 = vunpack.c.h.b16 %v159
    %v324 = vunpack.c.l.b16 %v160
    %v325 = vunpack.c.h.b16 %v160
    %v326 = vunpack.c.l.b16 %v161
    %v327 = vunpack.c.h.b16 %v161
    %v328 = vunpack.c.l.b16 %v162
    %v329 = vunpack.c.h.b16 %v162
    %v330 = vunpack.c.l.b16 %v163
    %v331 = vunpack.c.h.b16 %v163
    %v332 = vunpack.c.l.b16 %v164
    %v333 = vunpack.c.h.b16 %v164
    %v334 = vunpack.c.l.b16 %v165
    %v335 = vunpack.c.h.b16 %v165
    %v336 = vunpack.c.l.b16 %v166
    %v337 = vunpack.c.h.b16 %v166
    %v338 = vunpack.c.l.b16 %v167
    %v339 = vunpack.c.h.b16 %v167
    %v340 = vunpack.c.l.b16 %v168
    %v341 = vunpack.c.h.b16 %v168
    %v342 = vunpack.c.l.b16 %v169
    %v343 = vunpack.c.h.b16 %v169
    %v344 = vunpack.c.l.b16 %v170
    %v345 = vunpack.c.h.b16 %v170
    %v346 = vunpack.c.l.b16 %v171
    %v347 = vunpack.c.h.b16 %v171
    %v348 = vunpack.c.l.b16 %v172
    %v349 = vunpack.c.h.b16 %v172
    %v350 = vunpack.c.l.b16 %v173
    %v351 = vunpack.c.h.b16 %v173
    %v352 = vunpack.c.l.b16 %v174
    %v353 = vunpack.c.h.b16 %v174
    %v354 = vunpack.c.l.b16 %v175
    %v355 = vunpack.c.h.b16 %v175
    %v356 = vunpack.c.l.b16 %v176
    %v357 = vunpack.c.h.b16 %v176
    %v358 = vunpack.c.l.b16 %v177
    %v359 = vunpack.c.h.b16 %v177
    %v360 = vunpack.c.l.b16 %v178
    %v361 = vunpack.c.h.b16 %v178
    %v362 = vunpack.c.l.b16 %v179
    %v363 = vunpack.c.h.b16 %v179
    %v364 = vunpack.c.l.b16 %v180
    %v365 = vunpack.c.h.b16 %v180
    %v366 = vunpack.c.l.b16 %v181
    %v367 = vunpack.c.h.b16 %v181
    %v368 = vunpack.c.l.b16 %v182
    %v369 = vunpack.c.h.b16 %v182
    %v370 = vunpack.c.l.b16 %v183
    %v371 = vunpack.c.h.b16 %v183
    %v372 = vunpack.c.l.b16 %v184
    %v373 = vunpack.c.h.b16 %v184
    %v374 = vunpack.c.l.b16 %v185
    %v375 = vunpack.c.h.b16 %v185
    %v376 = vunpack.c.l.b16 %v186
    %v377 = vunpack.c.h.b16 %v186
    %v378 = vunpack.c.l.b16 %v187
    %v379 = vunpack.c.h.b16 %v187
    %v380 = vunpack.c.l.b16 %v188
    %v381 = vunpack.c.h.b16 %v188
    %v382 = vunpack.c.l.b16 %v189
    %v383 = vunpack.c.h.b16 %v189
    %v384 = vunpack.c.l.b16 %v190
    %v385 = vunpack.c.h.b16 %v190
    %v386 = vunpack.c.l.b16 %v191
    %v387 = vunpack.c.h.b16 %v191
    %v388 = vunpack.c.l.b16 %v192
    %v389 = vunpack.c.h.b16 %v192
    %v390 = vunpack.c.l.b16 %v193
    %v391 = vunpack.c.h.b16 %v193
    %v392 = vunpack.c.l.b16 %v194
    %v393 = vunpack.c.h.b16 %v194
    %v394 = vunpack.c.l.b16 %v195
    %v395 = vunpack.c.h.b16 %v195
    %v396 = vunpack.c.l.b16 %v196
    %v397 = vunpack.c.h.b16 %v196
    %v398 = vunpack.c.l.b16 %v197
    %v399 = vunpack.c.h.b16 %v197
    %v400 = vunpack.c.l.b16 %v198
    %v401 = vunpack.c.h.b16 %v198
    %v402 = vunpack.c.l.b16 %v199
    %v403 = vunpack.c.h.b16 %v199
    %v404 = vpack.c.b16 %v278, %v276
    %v405 = vpack.c.b16 %v279, %v277
    %v406 = vpack.c.b16 %v282, %v280
    %v407 = vpack.c.b16 %v283, %v281
    %v408 = vpack.c.b16 %v286, %v284
    %v409 = vpack.c.b16 %v287, %v285
    %v410 = vpack.c.b16 %v290, %v288
    %v411 = vpack.c.b16 %v291, %v289
    %v412 = vpack.c.b16 %v294, %v292
    %v413 = vpack.c.b16 %v295, %v293
    %v414 = vpack.c.b16 %v298, %v296
    %v415 = vpack.c.b16 %v299, %v297
    %v416 = vpack.c.b16 %v302, %v300
    %v417 = vpack.c.b16 %v303, %v301
    %v418 = vpack.c.b16 %v306, %v304
    %v419 = vpack.c.b16 %v307, %v305
    %v420 = vpack.c.b16 %v310, %v308
    %v421 = vpack.c.b16 %v311, %v309
    %v422 = vpack.c.b16 %v314, %v312
    %v423 = vpack.c.b16 %v315, %v313
    %v424 = vpack.c.b16 %v318, %v316
    %v425 = vpack.c.b16 %v319, %v317
    %v426 = vpack.c.b16 %v322, %v320
    %v427 = vpack.c.b16 %v323, %v321
    %v428 = vpack.c.b16 %v326, %v324
    %v429 = vpack.c.b16 %v327, %v325
    %v430 = vpack.c.b16 %v330, %v328
    %v431 = vpack.c.b16 %v331, %v329
    %v432 = vpack.c.b16 %v334, %v332
    %v433 = vpack.c.b16 %v335, %v333
    %v434 = vpack.c.b16 %v338, %v336
    %v435 = vpack.c.b16 %v339, %v337
    %v436 = vpack.c.b16 %v342, %v340
    %v437 = vpack.c.b16 %v343, %v341
    %v438 = vpack.c.b16 %v346, %v344
    %v439 = vpack.c.b16 %v347, %v345
    %v440 = vpack.c.b16 %v350, %v348
    %v441 = vpack.c.b16 %v351, %v349
    %v442 = vpack.c.b16 %v354, %v352
    %v443 = vpack.c.b16 %v355, %v353
    %v444 = vpack.c.b16 %v358, %v356
    %v445 = vpack.c.b16 %v359, %v357
    %v446 = vpack.c.b16 %v362, %v360
    %v447 = vpack.c.b16 %v363, %v361
    %v448 = vpack.c.b16 %v366, %v364
    %v449 = vpack.c.b16 %v367, %v365
    %v450 = vpack.c.b16 %v370, %v368
    %v451 = vpack.c.b16 %v371, %v369
    %v452 = vpack.c.b16 %v374, %v372
    %v453 = vpack.c.b16 %v375, %v373
    %v454 = vpack.c.b16 %v378, %v376
    %v455 = vpack.c.b16 %v379, %v377
    %v456 = vpack.c.b16 %v382, %v380
    %v457 = vpack.c.b16 %v383, %v381
    %v458 = vpack.c.b16 %v386, %v384
    %v459 = vpack.c.b16 %v387, %v385
    %v460 = vpack.c.b16 %v390, %v388
    %v461 = vpack.c.b16 %v391, %v389
    %v462 = vpack.c.b16 %v394, %v392
    %v463 = vpack.c.b16 %v395, %v393
    %v464 = vpack.c.b16 %v398, %v396
    %v465 = vpack.c.b16 %v399, %v397
    %v466 = vpack.c.b16 %v402, %v400
    %v467 = vpack.c.b16 %v403, %v401
    %532 = vmatprep.subr.bf16.mxu0 %v419
    %533 = vmatpush1.bf16.msra.mxu0 %v418
    %534 = vmatprep.subr.bf16.mxu0 %v417
    %535 = vmatpush1.bf16.msra.mxu0 %v416
    %536 = vmatprep.subr.bf16.mxu0 %v415
    %537 = vmatpush1.bf16.msra.mxu0 %v414
    %538 = vmatprep.subr.bf16.mxu0 %v413
    %539 = vmatpush1.bf16.msra.mxu0 %v412
    %540 = vmatprep.subr.bf16.mxu0 %v411
    %541 = vmatpush1.bf16.msra.mxu0 %v410
    %542 = vmatprep.subr.bf16.mxu0 %v409
    %543 = vmatpush1.bf16.msra.mxu0 %v408
    %544 = vmatprep.subr.bf16.mxu0 %v407
    %545 = vmatpush1.bf16.msra.mxu0 %v406
    %546 = vmatprep.subr.bf16.mxu0 %v405
    %547 = vmatpush1.bf16.msra.mxu0 %v404
    %548 = vmatprep.subr.bf16.mxu0 %v435
    %549 = vmatpush2.bf16.msra.mxu0 %v434
    %550 = vmatprep.subr.bf16.mxu0 %v433
    %551 = vmatpush2.bf16.msra.mxu0 %v432
    %552 = vmatprep.subr.bf16.mxu0 %v431
    %553 = vmatpush2.bf16.msra.mxu0 %v430
    %554 = vmatprep.subr.bf16.mxu0 %v429
    %555 = vmatpush2.bf16.msra.mxu0 %v428
    %556 = vmatprep.subr.bf16.mxu0 %v427
    %557 = vmatpush2.bf16.msra.mxu0 %v426
    %558 = vmatprep.subr.bf16.mxu0 %v425
    %559 = vmatpush2.bf16.msra.mxu0 %v424
    %560 = vmatprep.subr.bf16.mxu0 %v423
    %561 = vmatpush2.bf16.msra.mxu0 %v422
    %562 = vmatprep.subr.bf16.mxu0 %v421
    %563 = vmatpush2.bf16.msra.mxu0 %v420
    %564 = vmatprep.mubr.bf16.mxu0 %v133
    %565 = vmatmul.mubr.bf16.gmra.mxu0 %v132
    %v566 = vpop.f32.mrf.mxu0
    %v567 = vadd.f32 %v205, %v566
    %v568 = vpop.f32.mrf.mxu0
    %v569 = vadd.f32 %v209, %v568
    %v570 = vpop.f32.mrf.mxu0
    %v571 = vadd.f32 %v205, %v570
    %v572 = vpop.f32.mrf.mxu0
    %v573 = vadd.f32 %v209, %v572
    %574 = vdwg.mxu0
    %575 = vmatprep.subr.bf16.mxu0 %v451
    %576 = vmatpush1.bf16.msra.mxu0 %v450
    %577 = vmatprep.subr.bf16.mxu0 %v449
    %578 = vmatpush1.bf16.msra.mxu0 %v448
    %579 = vmatprep.subr.bf16.mxu0 %v447
    %580 = vmatpush1.bf16.msra.mxu0 %v446
    %581 = vmatprep.subr.bf16.mxu0 %v445
    %582 = vmatpush1.bf16.msra.mxu0 %v444
    %583 = vmatprep.subr.bf16.mxu0 %v443
    %584 = vmatpush1.bf16.msra.mxu0 %v442
    %585 = vmatprep.subr.bf16.mxu0 %v441
    %586 = vmatpush1.bf16.msra.mxu0 %v440
    %587 = vmatprep.subr.bf16.mxu0 %v439
    %588 = vmatpush1.bf16.msra.mxu0 %v438
    %589 = vmatprep.subr.bf16.mxu0 %v437
    %590 = vmatpush1.bf16.msra.mxu0 %v436
    %591 = vmatprep.subr.bf16.mxu0 %v467
    %592 = vmatpush2.bf16.msra.mxu0 %v466
    %593 = vmatprep.subr.bf16.mxu0 %v465
    %594 = vmatpush2.bf16.msra.mxu0 %v464
    %595 = vmatprep.subr.bf16.mxu0 %v463
    %596 = vmatpush2.bf16.msra.mxu0 %v462
    %597 = vmatprep.subr.bf16.mxu0 %v461
    %598 = vmatpush2.bf16.msra.mxu0 %v460
    %599 = vmatprep.subr.bf16.mxu0 %v459
    %600 = vmatpush2.bf16.msra.mxu0 %v458
    %601 = vmatprep.subr.bf16.mxu0 %v457
    %602 = vmatpush2.bf16.msra.mxu0 %v456
    %603 = vmatprep.subr.bf16.mxu0 %v455
    %604 = vmatpush2.bf16.msra.mxu0 %v454
    %605 = vmatprep.subr.bf16.mxu0 %v453
    %606 = vmatpush2.bf16.msra.mxu0 %v452
    %607 = vmatprep.mubr.bf16.mxu0 %v135
    %608 = vmatmul.mubr.bf16.gmra.mxu0 %v134
    %v609 = vpop.f32.mrf.mxu0
    %v610 = vadd.f32 %v567, %v609
    %v611 = vpop.f32.mrf.mxu0
    %v612 = vadd.f32 %v569, %v611
    %v613 = vpop.f32.mrf.mxu0
    %v614 = vadd.f32 %v571, %v613
    %v615 = vpop.f32.mrf.mxu0
    %v616 = vadd.f32 %v573, %v615
    %617 = vdwg.mxu0
    %v618 = vmax.f32 %v610, 0.0
    %v619 = vmax.f32 %v612, 0.0
    %v620 = vmax.f32 %v614, 0.0
    %v621 = vmax.f32 %v616, 0.0
    %v622 = vpack.c.bf16 %v620, %v618
    %v623 = vpack.c.bf16 %v621, %v619
    %v624 = vld [vmem:[#allocation7] sm:$0xff]
    %v625 = vld [vmem:[#allocation7 + $0x8] sm:$0xff]
    %v626 = vld [vmem:[#allocation7 + $0x10] sm:$0xff]
    %v627 = vld [vmem:[#allocation7 + $0x18] sm:$0xff]
    %v628 = vld [vmem:[#allocation7 + $0x20] sm:$0xff]
    %v629 = vld [vmem:[#allocation7 + $0x28] sm:$0xff]
    %v630 = vld [vmem:[#allocation7 + $0x30] sm:$0xff]
    %v631 = vld [vmem:[#allocation7 + $0x38] sm:$0xff]
    %v632 = vld [vmem:[#allocation7 + $0x40] sm:$0xff]
    %v633 = vld [vmem:[#allocation7 + $0x48] sm:$0xff]
    %v634 = vld [vmem:[#allocation7 + $0x50] sm:$0xff]
    %v635 = vld [vmem:[#allocation7 + $0x58] sm:$0xff]
    %v636 = vld [vmem:[#allocation7 + $0x60] sm:$0xff]
    %v637 = vld [vmem:[#allocation7 + $0x68] sm:$0xff]
    %v638 = vld [vmem:[#allocation7 + $0x70] sm:$0xff]
    %v639 = vld [vmem:[#allocation7 + $0x78] sm:$0xff]
    %v640 = vld [vmem:[#allocation7 + $0x80] sm:$0xff]
    %v641 = vld [vmem:[#allocation7 + $0x88] sm:$0xff]
    %v642 = vld [vmem:[#allocation7 + $0x90] sm:$0xff]
    %v643 = vld [vmem:[#allocation7 + $0x98] sm:$0xff]
    %v644 = vld [vmem:[#allocation7 + $0xa0] sm:$0xff]
    %v645 = vld [vmem:[#allocation7 + $0xa8] sm:$0xff]
    %v646 = vld [vmem:[#allocation7 + $0xb0] sm:$0xff]
    %v647 = vld [vmem:[#allocation7 + $0xb8] sm:$0xff]
    %v648 = vld [vmem:[#allocation7 + $0xc0] sm:$0xff]
    %v649 = vld [vmem:[#allocation7 + $0xc8] sm:$0xff]
    %v650 = vld [vmem:[#allocation7 + $0xd0] sm:$0xff]
    %v651 = vld [vmem:[#allocation7 + $0xd8] sm:$0xff]
    %v652 = vld [vmem:[#allocation7 + $0xe0] sm:$0xff]
    %v653 = vld [vmem:[#allocation7 + $0xe8] sm:$0xff]
    %v654 = vld [vmem:[#allocation7 + $0xf0] sm:$0xff]
    %v655 = vld [vmem:[#allocation7 + $0xf8] sm:$0xff]
    %v656 = vld [vmem:[%s4] sm:$0x3]
    %v658 = vlaneseq
    %v659 = vshrl.u32 %v658, 7
    %v660 = vsub.s32 0, %v659
    %v661 = vrot.slane %v656, %v660
    %v662 = vlaneseq
    %v663 = vshrl.u32 %v662, 7
    %v664 = vsub.s32 1, %v663
    %v665 = vrot.slane %v656, %v664
    %v700 = vunpack.c.l.b16 %v624
    %v701 = vunpack.c.h.b16 %v624
    %v702 = vunpack.c.l.b16 %v625
    %v703 = vunpack.c.h.b16 %v625
    %v704 = vunpack.c.l.b16 %v626
    %v705 = vunpack.c.h.b16 %v626
    %v706 = vunpack.c.l.b16 %v627
    %v707 = vunpack.c.h.b16 %v627
    %v708 = vunpack.c.l.b16 %v628
    %v709 = vunpack.c.h.b16 %v628
    %v710 = vunpack.c.l.b16 %v629
    %v711 = vunpack.c.h.b16 %v629
    %v712 = vunpack.c.l.b16 %v630
    %v713 = vunpack.c.h.b16 %v630
    %v714 = vunpack.c.l.b16 %v631
    %v715 = vunpack.c.h.b16 %v631
    %v716 = vunpack.c.l.b16 %v632
    %v717 = vunpack.c.h.b16 %v632
    %v718 = vunpack.c.l.b16 %v633
    %v719 = vunpack.c.h.b16 %v633
    %v720 = vunpack.c.l.b16 %v634
    %v721 = vunpack.c.h.b16 %v634
    %v722 = vunpack.c.l.b16 %v635
    %v723 = vunpack.c.h.b16 %v635
    %v724 = vunpack.c.l.b16 %v636
    %v725 = vunpack.c.h.b16 %v636
    %v726 = vunpack.c.l.b16 %v637
    %v727 = vunpack.c.h.b16 %v637
    %v728 = vunpack.c.l.b16 %v638
    %v729 = vunpack.c.h.b16 %v638
    %v730 = vunpack.c.l.b16 %v639
    %v731 = vunpack.c.h.b16 %v639
    %v732 = vunpack.c.l.b16 %v640
    %v733 = vunpack.c.h.b16 %v640
    %v734 = vunpack.c.l.b16 %v641
    %v735 = vunpack.c.h.b16 %v641
    %v736 = vunpack.c.l.b16 %v642
    %v737 = vunpack.c.h.b16 %v642
    %v738 = vunpack.c.l.b16 %v643
    %v739 = vunpack.c.h.b16 %v643
    %v740 = vunpack.c.l.b16 %v644
    %v741 = vunpack.c.h.b16 %v644
    %v742 = vunpack.c.l.b16 %v645
    %v743 = vunpack.c.h.b16 %v645
    %v744 = vunpack.c.l.b16 %v646
    %v745 = vunpack.c.h.b16 %v646
    %v746 = vunpack.c.l.b16 %v647
    %v747 = vunpack.c.h.b16 %v647
    %v748 = vunpack.c.l.b16 %v648
    %v749 = vunpack.c.h.b16 %v648
    %v750 = vunpack.c.l.b16 %v649
    %v751 = vunpack.c.h.b16 %v649
    %v752 = vunpack.c.l.b16 %v650
    %v753 = vunpack.c.h.b16 %v650
    %v754 = vunpack.c.l.b16 %v651
    %v755 = vunpack.c.h.b16 %v651
    %v756 = vunpack.c.l.b16 %v652
    %v757 = vunpack.c.h.b16 %v652
    %v758 = vunpack.c.l.b16 %v653
    %v759 = vunpack.c.h.b16 %v653
    %v760 = vunpack.c.l.b16 %v654
    %v761 = vunpack.c.h.b16 %v654
    %v762 = vunpack.c.l.b16 %v655
    %v763 = vunpack.c.h.b16 %v655
    %v764 = vpack.c.b16 %v702, %v700
    %v765 = vpack.c.b16 %v703, %v701
    %v766 = vpack.c.b16 %v706, %v704
    %v767 = vpack.c.b16 %v707, %v705
    %v768 = vpack.c.b16 %v710, %v708
    %v769 = vpack.c.b16 %v711, %v709
    %v770 = vpack.c.b16 %v714, %v712
    %v771 = vpack.c.b16 %v715, %v713
    %v772 = vpack.c.b16 %v718, %v716
    %v773 = vpack.c.b16 %v719, %v717
    %v774 = vpack.c.b16 %v722, %v720
    %v775 = vpack.c.b16 %v723, %v721
    %v776 = vpack.c.b16 %v726, %v724
    %v777 = vpack.c.b16 %v727, %v725
    %v778 = vpack.c.b16 %v730, %v728
    %v779 = vpack.c.b16 %v731, %v729
    %v780 = vpack.c.b16 %v734, %v732
    %v781 = vpack.c.b16 %v735, %v733
    %v782 = vpack.c.b16 %v738, %v736
    %v783 = vpack.c.b16 %v739, %v737
    %v784 = vpack.c.b16 %v742, %v740
    %v785 = vpack.c.b16 %v743, %v741
    %v786 = vpack.c.b16 %v746, %v744
    %v787 = vpack.c.b16 %v747, %v745
    %v788 = vpack.c.b16 %v750, %v748
    %v789 = vpack.c.b16 %v751, %v749
    %v790 = vpack.c.b16 %v754, %v752
    %v791 = vpack.c.b16 %v755, %v753
    %v792 = vpack.c.b16 %v758, %v756
    %v793 = vpack.c.b16 %v759, %v757
    %v794 = vpack.c.b16 %v762, %v760
    %v795 = vpack.c.b16 %v763, %v761
    %828 = vmatprep.subr.bf16.mxu0 %v779
    %829 = vmatpush1.bf16.msra.mxu0 %v778
    %830 = vmatprep.subr.bf16.mxu0 %v777
    %831 = vmatpush1.bf16.msra.mxu0 %v776
    %832 = vmatprep.subr.bf16.mxu0 %v775
    %833 = vmatpush1.bf16.msra.mxu0 %v774
    %834 = vmatprep.subr.bf16.mxu0 %v773
    %835 = vmatpush1.bf16.msra.mxu0 %v772
    %836 = vmatprep.subr.bf16.mxu0 %v771
    %837 = vmatpush1.bf16.msra.mxu0 %v770
    %838 = vmatprep.subr.bf16.mxu0 %v769
    %839 = vmatpush1.bf16.msra.mxu0 %v768
    %840 = vmatprep.subr.bf16.mxu0 %v767
    %841 = vmatpush1.bf16.msra.mxu0 %v766
    %842 = vmatprep.subr.bf16.mxu0 %v765
    %843 = vmatpush1.bf16.msra.mxu0 %v764
    %844 = vmatprep.subr.bf16.mxu0 %v795
    %845 = vmatpush2.bf16.msra.mxu0 %v794
    %846 = vmatprep.subr.bf16.mxu0 %v793
    %847 = vmatpush2.bf16.msra.mxu0 %v792
    %848 = vmatprep.subr.bf16.mxu0 %v791
    %849 = vmatpush2.bf16.msra.mxu0 %v790
    %850 = vmatprep.subr.bf16.mxu0 %v789
    %851 = vmatpush2.bf16.msra.mxu0 %v788
    %852 = vmatprep.subr.bf16.mxu0 %v787
    %853 = vmatpush2.bf16.msra.mxu0 %v786
    %854 = vmatprep.subr.bf16.mxu0 %v785
    %855 = vmatpush2.bf16.msra.mxu0 %v784
    %856 = vmatprep.subr.bf16.mxu0 %v783
    %857 = vmatpush2.bf16.msra.mxu0 %v782
    %858 = vmatprep.subr.bf16.mxu0 %v781
    %859 = vmatpush2.bf16.msra.mxu0 %v780
    %860 = vmatprep.mubr.bf16.mxu0 %v623
    %861 = vmatmul.mubr.bf16.gmra.mxu0 %v622
    %v862 = vpop.f32.mrf.mxu0
    %v863 = vadd.f32 %v661, %v862
    %v864 = vpop.f32.mrf.mxu0
    %v865 = vadd.f32 %v665, %v864
    %v866 = vpop.f32.mrf.mxu0
    %v867 = vadd.f32 %v661, %v866
    %v868 = vpop.f32.mrf.mxu0
    %v869 = vadd.f32 %v665, %v868
    %870 = vdwg.mxu0
    %v871 = vmax.f32 %v863, 0.0
    %v872 = vmax.f32 %v865, 0.0
    %v873 = vmax.f32 %v867, 0.0
    %v874 = vmax.f32 %v869, 0.0
    %v875 = vpack.c.bf16 %v873, %v871
    %v876 = vpack.c.bf16 %v874, %v872
    %v877 = vld [vmem:[#allocation8] sm:$0xf]
    %v878 = vld [vmem:[#allocation8 + $0x4] sm:$0xf]
    %v879 = vld [vmem:[#allocation8 + $0x8] sm:$0xf]
    %v880 = vld [vmem:[#allocation8 + $0xc] sm:$0xf]
    %v881 = vld [vmem:[#allocation8 + $0x10] sm:$0xf]
    %v882 = vld [vmem:[#allocation8 + $0x14] sm:$0xf]
    %v883 = vld [vmem:[#allocation8 + $0x18] sm:$0xf]
    %v884 = vld [vmem:[#allocation8 + $0x1c] sm:$0xf]
    %v885 = vld [vmem:[#allocation8 + $0x20] sm:$0xf]
    %v886 = vld [vmem:[#allocation8 + $0x24] sm:$0xf]
    %v887 = vld [vmem:[#allocation8 + $0x28] sm:$0xf]
    %v888 = vld [vmem:[#allocation8 + $0x2c] sm:$0xf]
    %v889 = vld [vmem:[#allocation8 + $0x30] sm:$0xf]
    %v890 = vld [vmem:[#allocation8 + $0x34] sm:$0xf]
    %v891 = vld [vmem:[#allocation8 + $0x38] sm:$0xf]
    %v892 = vld [vmem:[#allocation8 + $0x3c] sm:$0xf]
    %v893 = vld [vmem:[#allocation8 + $0x40] sm:$0xf]
    %v894 = vld [vmem:[#allocation8 + $0x44] sm:$0xf]
    %v895 = vld [vmem:[#allocation8 + $0x48] sm:$0xf]
    %v896 = vld [vmem:[#allocation8 + $0x4c] sm:$0xf]
    %v897 = vld [vmem:[#allocation8 + $0x50] sm:$0xf]
    %v898 = vld [vmem:[#allocation8 + $0x54] sm:$0xf]
    %v899 = vld [vmem:[#allocation8 + $0x58] sm:$0xf]
    %v900 = vld [vmem:[#allocation8 + $0x5c] sm:$0xf]
    %v901 = vld [vmem:[#allocation8 + $0x60] sm:$0xf]
    %v902 = vld [vmem:[#allocation8 + $0x64] sm:$0xf]
    %v903 = vld [vmem:[#allocation8 + $0x68] sm:$0xf]
    %v904 = vld [vmem:[#allocation8 + $0x6c] sm:$0xf]
    %v905 = vld [vmem:[#allocation8 + $0x70] sm:$0xf]
    %v906 = vld [vmem:[#allocation8 + $0x74] sm:$0xf]
    %v907 = vld [vmem:[#allocation8 + $0x78] sm:$0xf]
    %v908 = vld [vmem:[#allocation8 + $0x7c] sm:$0xf]
    %v909 = vld [vmem:[%s6] sm:$0x1]
    %v911 = vlaneseq
    %v912 = vshrl.u32 %v911, 7
    %v913 = vsub.s32 0, %v912
    %v914 = vrot.slane %v909, %v913
    %v948 = vunpack.c.l.b16 %v877
    %v949 = vunpack.c.l.b16 %v878
    %v950 = vunpack.c.l.b16 %v879
    %v951 = vunpack.c.l.b16 %v880
    %v952 = vunpack.c.l.b16 %v881
    %v953 = vunpack.c.l.b16 %v882
    %v954 = vunpack.c.l.b16 %v883
    %v955 = vunpack.c.l.b16 %v884
    %v956 = vunpack.c.l.b16 %v885
    %v957 = vunpack.c.l.b16 %v886
    %v958 = vunpack.c.l.b16 %v887
    %v959 = vunpack.c.l.b16 %v888
    %v960 = vunpack.c.l.b16 %v889
    %v961 = vunpack.c.l.b16 %v890
    %v962 = vunpack.c.l.b16 %v891
    %v963 = vunpack.c.l.b16 %v892
    %v964 = vunpack.c.l.b16 %v893
    %v965 = vunpack.c.l.b16 %v894
    %v966 = vunpack.c.l.b16 %v895
    %v967 = vunpack.c.l.b16 %v896
    %v968 = vunpack.c.l.b16 %v897
    %v969 = vunpack.c.l.b16 %v898
    %v970 = vunpack.c.l.b16 %v899
    %v971 = vunpack.c.l.b16 %v900
    %v972 = vunpack.c.l.b16 %v901
    %v973 = vunpack.c.l.b16 %v902
    %v974 = vunpack.c.l.b16 %v903
    %v975 = vunpack.c.l.b16 %v904
    %v976 = vunpack.c.l.b16 %v905
    %v977 = vunpack.c.l.b16 %v906
    %v978 = vunpack.c.l.b16 %v907
    %v979 = vunpack.c.l.b16 %v908
    %v980 = vpack.c.b16 %v949, %v948
    %v981 = vpack.c.b16 %v951, %v950
    %v982 = vpack.c.b16 %v953, %v952
    %v983 = vpack.c.b16 %v955, %v954
    %v984 = vpack.c.b16 %v957, %v956
    %v985 = vpack.c.b16 %v959, %v958
    %v986 = vpack.c.b16 %v961, %v960
    %v987 = vpack.c.b16 %v963, %v962
    %v988 = vpack.c.b16 %v965, %v964
    %v989 = vpack.c.b16 %v967, %v966
    %v990 = vpack.c.b16 %v969, %v968
    %v991 = vpack.c.b16 %v971, %v970
    %v992 = vpack.c.b16 %v973, %v972
    %v993 = vpack.c.b16 %v975, %v974
    %v994 = vpack.c.b16 %v977, %v976
    %v995 = vpack.c.b16 %v979, %v978
    %1012 = vmatprep.subr.bf16.mxu0 0
    %1013 = vmatpush1.bf16.msra.mxu0 %v987
    %1014 = vmatprep.subr.bf16.mxu0 0
    %1015 = vmatpush1.bf16.msra.mxu0 %v986
    %1016 = vmatprep.subr.bf16.mxu0 0
    %1017 = vmatpush1.bf16.msra.mxu0 %v985
    %1018 = vmatprep.subr.bf16.mxu0 0
    %1019 = vmatpush1.bf16.msra.mxu0 %v984
    %1020 = vmatprep.subr.bf16.mxu0 0
    %1021 = vmatpush1.bf16.msra.mxu0 %v983
    %1022 = vmatprep.subr.bf16.mxu0 0
    %1023 = vmatpush1.bf16.msra.mxu0 %v982
    %1024 = vmatprep.subr.bf16.mxu0 0
    %1025 = vmatpush1.bf16.msra.mxu0 %v981
    %1026 = vmatprep.subr.bf16.mxu0 0
    %1027 = vmatpush1.bf16.msra.mxu0 %v980
    %1028 = vmatprep.subr.bf16.mxu0 0
    %1029 = vmatpush2.bf16.msra.mxu0 %v995
    %1030 = vmatprep.subr.bf16.mxu0 0
    %1031 = vmatpush2.bf16.msra.mxu0 %v994
    %1032 = vmatprep.subr.bf16.mxu0 0
    %1033 = vmatpush2.bf16.msra.mxu0 %v993
    %1034 = vmatprep.subr.bf16.mxu0 0
    %1035 = vmatpush2.bf16.msra.mxu0 %v992
    %1036 = vmatprep.subr.bf16.mxu0 0
    %1037 = vmatpush2.bf16.msra.mxu0 %v991
    %1038 = vmatprep.subr.bf16.mxu0 0
    %1039 = vmatpush2.bf16.msra.mxu0 %v990
    %1040 = vmatprep.subr.bf16.mxu0 0
    %1041 = vmatpush2.bf16.msra.mxu0 %v989
    %1042 = vmatprep.subr.bf16.mxu0 0
    %1043 = vmatpush2.bf16.msra.mxu0 %v988
    %1044 = vmatprep.mubr.bf16.mxu0 %v876
    %1045 = vmatmul.mubr.bf16.gmra.mxu0 %v875
    %v1046 = vpop.f32.mrf.mxu0
    %v1047 = vadd.f32 %v914, %v1046
    %v1048 = vpop.f32.mrf.mxu0
    %v1049 = vpop.f32.mrf.mxu0
    %v1050 = vadd.f32 %v914, %v1049
    %v1051 = vpop.f32.mrf.mxu0
    %1052 = vdwg.mxu0
    %1053 = vst [vmem:[#allocation13] sm:$0xff] %v1047
    %1054 = vst [vmem:[#allocation13 + $0x8] sm:$0xff] %v1050
    %v1055 = vpack.c.bf16 %v1050, %v1047
    %v1056 = vld [vmem:[#allocation10] sm:$0xff]
    %v1057 = vld [vmem:[#allocation10 + $0x8] sm:$0xff]
    %v1058 = vld [vmem:[#allocation10 + $0x10] sm:$0xff]
    %v1059 = vld [vmem:[#allocation10 + $0x18] sm:$0xff]
    %v1060 = vld [vmem:[#allocation10 + $0x20] sm:$0xff]
    %v1061 = vld [vmem:[#allocation10 + $0x28] sm:$0xff]
    %v1062 = vld [vmem:[#allocation10 + $0x30] sm:$0xff]
    %v1063 = vld [vmem:[#allocation10 + $0x38] sm:$0xff]
    %v1064 = vld [vmem:[#allocation10 + $0x40] sm:$0xff]
    %v1065 = vld [vmem:[#allocation10 + $0x48] sm:$0xff]
    %v1066 = vld [vmem:[#allocation10 + $0x50] sm:$0xff]
    %v1067 = vld [vmem:[#allocation10 + $0x58] sm:$0xff]
    %v1068 = vld [vmem:[#allocation10 + $0x60] sm:$0xff]
    %v1069 = vld [vmem:[#allocation10 + $0x68] sm:$0xff]
    %v1070 = vld [vmem:[#allocation10 + $0x70] sm:$0xff]
    %v1071 = vld [vmem:[#allocation10 + $0x78] sm:$0xff]
    %v1072 = vld [vmem:[%s8] sm:$0x3]
    %v1074 = vlaneseq
    %v1075 = vshrl.u32 %v1074, 7
    %v1076 = vsub.s32 0, %v1075
    %v1077 = vrot.slane %v1072, %v1076
    %v1078 = vlaneseq
    %v1079 = vshrl.u32 %v1078, 7
    %v1080 = vsub.s32 1, %v1079
    %v1081 = vrot.slane %v1072, %v1080
    %v1100 = vunpack.c.l.b16 %v1056
    %v1101 = vunpack.c.h.b16 %v1056
    %v1102 = vunpack.c.l.b16 %v1057
    %v1103 = vunpack.c.h.b16 %v1057
    %v1104 = vunpack.c.l.b16 %v1058
    %v1105 = vunpack.c.h.b16 %v1058
    %v1106 = vunpack.c.l.b16 %v1059
    %v1107 = vunpack.c.h.b16 %v1059
    %v1108 = vunpack.c.l.b16 %v1060
    %v1109 = vunpack.c.h.b16 %v1060
    %v1110 = vunpack.c.l.b16 %v1061
    %v1111 = vunpack.c.h.b16 %v1061
    %v1112 = vunpack.c.l.b16 %v1062
    %v1113 = vunpack.c.h.b16 %v1062
    %v1114 = vunpack.c.l.b16 %v1063
    %v1115 = vunpack.c.h.b16 %v1063
    %v1116 = vunpack.c.l.b16 %v1064
    %v1117 = vunpack.c.h.b16 %v1064
    %v1118 = vunpack.c.l.b16 %v1065
    %v1119 = vunpack.c.h.b16 %v1065
    %v1120 = vunpack.c.l.b16 %v1066
    %v1121 = vunpack.c.h.b16 %v1066
    %v1122 = vunpack.c.l.b16 %v1067
    %v1123 = vunpack.c.h.b16 %v1067
    %v1124 = vunpack.c.l.b16 %v1068
    %v1125 = vunpack.c.h.b16 %v1068
    %v1126 = vunpack.c.l.b16 %v1069
    %v1127 = vunpack.c.h.b16 %v1069
    %v1128 = vunpack.c.l.b16 %v1070
    %v1129 = vunpack.c.h.b16 %v1070
    %v1130 = vunpack.c.l.b16 %v1071
    %v1131 = vunpack.c.h.b16 %v1071
    %v1132 = vpack.c.b16 %v1102, %v1100
    %v1133 = vpack.c.b16 %v1103, %v1101
    %v1134 = vpack.c.b16 %v1106, %v1104
    %v1135 = vpack.c.b16 %v1107, %v1105
    %v1136 = vpack.c.b16 %v1110, %v1108
    %v1137 = vpack.c.b16 %v1111, %v1109
    %v1138 = vpack.c.b16 %v1114, %v1112
    %v1139 = vpack.c.b16 %v1115, %v1113
    %v1140 = vpack.c.b16 %v1118, %v1116
    %v1141 = vpack.c.b16 %v1119, %v1117
    %v1142 = vpack.c.b16 %v1122, %v1120
    %v1143 = vpack.c.b16 %v1123, %v1121
    %v1144 = vpack.c.b16 %v1126, %v1124
    %v1145 = vpack.c.b16 %v1127, %v1125
    %v1146 = vpack.c.b16 %v1130, %v1128
    %v1147 = vpack.c.b16 %v1131, %v1129
    %1164 = vmatprep.subr.bf16.mxu0 %v1147
    %1165 = vmatpush1.bf16.msra.mxu0 %v1146
    %1166 = vmatprep.subr.bf16.mxu0 %v1145
    %1167 = vmatpush1.bf16.msra.mxu0 %v1144
    %1168 = vmatprep.subr.bf16.mxu0 %v1143
    %1169 = vmatpush1.bf16.msra.mxu0 %v1142
    %1170 = vmatprep.subr.bf16.mxu0 %v1141
    %1171 = vmatpush1.bf16.msra.mxu0 %v1140
    %1172 = vmatprep.subr.bf16.mxu0 %v1139
    %1173 = vmatpush1.bf16.msra.mxu0 %v1138
    %1174 = vmatprep.subr.bf16.mxu0 %v1137
    %1175 = vmatpush1.bf16.msra.mxu0 %v1136
    %1176 = vmatprep.subr.bf16.mxu0 %v1135
    %1177 = vmatpush1.bf16.msra.mxu0 %v1134
    %1178 = vmatprep.subr.bf16.mxu0 %v1133
    %1179 = vmatpush1.bf16.msra.mxu0 %v1132
    %1180 = vmatprep.subr.bf16.mxu0 0
    %1181 = vmatpush2.bf16.msra.mxu0 0
    %1182 = vmatprep.subr.bf16.mxu0 0
    %1183 = vmatpush2.bf16.msra.mxu0 0
    %1184 = vmatprep.subr.bf16.mxu0 0
    %1185 = vmatpush2.bf16.msra.mxu0 0
    %1186 = vmatprep.subr.bf16.mxu0 0
    %1187 = vmatpush2.bf16.msra.mxu0 0
    %1188 = vmatprep.subr.bf16.mxu0 0
    %1189 = vmatpush2.bf16.msra.mxu0 0
    %1190 = vmatprep.subr.bf16.mxu0 0
    %1191 = vmatpush2.bf16.msra.mxu0 0
    %1192 = vmatprep.subr.bf16.mxu0 0
    %1193 = vmatpush2.bf16.msra.mxu0 0
    %1194 = vmatprep.subr.bf16.mxu0 0
    %1195 = vmatpush2.bf16.msra.mxu0 0
    %1196 = vmatprep.mubr.bf16.mxu0 0
    %1197 = vmatmul.mubr.bf16.gmra.mxu0 %v1055
    %v1198 = vpop.f32.mrf.mxu0
    %v1199 = vadd.f32 %v1077, %v1198
    %v1200 = vpop.f32.mrf.mxu0
    %v1201 = vadd.f32 %v1081, %v1200
    %v1202 = vpop.f32.mrf.mxu0
    %v1203 = vadd.f32 %v1077, %v1202
    %v1204 = vpop.f32.mrf.mxu0
    %v1205 = vadd.f32 %v1081, %v1204
    %1206 = vdwg.mxu0
    %v1207 = vmax.f32 %v1199, 0.0
    %v1208 = vmax.f32 %v1201, 0.0
    %v1209 = vmax.f32 %v1203, 0.0
    %v1210 = vmax.f32 %v1205, 0.0
    %v1211 = vpack.c.bf16 %v1209, %v1207
    %v1212 = vpack.c.bf16 %v1210, %v1208
    %v1213 = vld [vmem:[#allocation11] sm:$0xf]
    %v1214 = vld [vmem:[#allocation11 + $0x4] sm:$0xf]
    %v1215 = vld [vmem:[#allocation11 + $0x8] sm:$0xf]
    %v1216 = vld [vmem:[#allocation11 + $0xc] sm:$0xf]
    %v1217 = vld [vmem:[#allocation11 + $0x10] sm:$0xf]
    %v1218 = vld [vmem:[#allocation11 + $0x14] sm:$0xf]
    %v1219 = vld [vmem:[#allocation11 + $0x18] sm:$0xf]
    %v1220 = vld [vmem:[#allocation11 + $0x1c] sm:$0xf]
    %v1221 = vld [vmem:[#allocation11 + $0x20] sm:$0xf]
    %v1222 = vld [vmem:[#allocation11 + $0x24] sm:$0xf]
    %v1223 = vld [vmem:[#allocation11 + $0x28] sm:$0xf]
    %v1224 = vld [vmem:[#allocation11 + $0x2c] sm:$0xf]
    %v1225 = vld [vmem:[#allocation11 + $0x30] sm:$0xf]
    %v1226 = vld [vmem:[#allocation11 + $0x34] sm:$0xf]
    %v1227 = vld [vmem:[#allocation11 + $0x38] sm:$0xf]
    %v1228 = vld [vmem:[#allocation11 + $0x3c] sm:$0xf]
    %v1229 = vld [vmem:[#allocation11 + $0x40] sm:$0xf]
    %v1230 = vld [vmem:[#allocation11 + $0x44] sm:$0xf]
    %v1231 = vld [vmem:[#allocation11 + $0x48] sm:$0xf]
    %v1232 = vld [vmem:[#allocation11 + $0x4c] sm:$0xf]
    %v1233 = vld [vmem:[#allocation11 + $0x50] sm:$0xf]
    %v1234 = vld [vmem:[#allocation11 + $0x54] sm:$0xf]
    %v1235 = vld [vmem:[#allocation11 + $0x58] sm:$0xf]
    %v1236 = vld [vmem:[#allocation11 + $0x5c] sm:$0xf]
    %v1237 = vld [vmem:[#allocation11 + $0x60] sm:$0xf]
    %v1238 = vld [vmem:[#allocation11 + $0x64] sm:$0xf]
    %v1239 = vld [vmem:[#allocation11 + $0x68] sm:$0xf]
    %v1240 = vld [vmem:[#allocation11 + $0x6c] sm:$0xf]
    %v1241 = vld [vmem:[#allocation11 + $0x70] sm:$0xf]
    %v1242 = vld [vmem:[#allocation11 + $0x74] sm:$0xf]
    %v1243 = vld [vmem:[#allocation11 + $0x78] sm:$0xf]
    %v1244 = vld [vmem:[#allocation11 + $0x7c] sm:$0xf]
    %v1245 = vld [vmem:[%s10] sm:$0x1]
    %v1247 = vlaneseq
    %v1248 = vshrl.u32 %v1247, 7
    %v1249 = vsub.s32 0, %v1248
    %v1250 = vrot.slane %v1245, %v1249
    %v1284 = vunpack.c.l.b16 %v1213
    %v1285 = vunpack.c.l.b16 %v1214
    %v1286 = vunpack.c.l.b16 %v1215
    %v1287 = vunpack.c.l.b16 %v1216
    %v1288 = vunpack.c.l.b16 %v1217
    %v1289 = vunpack.c.l.b16 %v1218
    %v1290 = vunpack.c.l.b16 %v1219
    %v1291 = vunpack.c.l.b16 %v1220
    %v1292 = vunpack.c.l.b16 %v1221
    %v1293 = vunpack.c.l.b16 %v1222
    %v1294 = vunpack.c.l.b16 %v1223
    %v1295 = vunpack.c.l.b16 %v1224
    %v1296 = vunpack.c.l.b16 %v1225
    %v1297 = vunpack.c.l.b16 %v1226
    %v1298 = vunpack.c.l.b16 %v1227
    %v1299 = vunpack.c.l.b16 %v1228
    %v1300 = vunpack.c.l.b16 %v1229
    %v1301 = vunpack.c.l.b16 %v1230
    %v1302 = vunpack.c.l.b16 %v1231
    %v1303 = vunpack.c.l.b16 %v1232
    %v1304 = vunpack.c.l.b16 %v1233
    %v1305 = vunpack.c.l.b16 %v1234
    %v1306 = vunpack.c.l.b16 %v1235
    %v1307 = vunpack.c.l.b16 %v1236
    %v1308 = vunpack.c.l.b16 %v1237
    %v1309 = vunpack.c.l.b16 %v1238
    %v1310 = vunpack.c.l.b16 %v1239
    %v1311 = vunpack.c.l.b16 %v1240
    %v1312 = vunpack.c.l.b16 %v1241
    %v1313 = vunpack.c.l.b16 %v1242
    %v1314 = vunpack.c.l.b16 %v1243
    %v1315 = vunpack.c.l.b16 %v1244
    %v1316 = vpack.c.b16 %v1285, %v1284
    %v1317 = vpack.c.b16 %v1287, %v1286
    %v1318 = vpack.c.b16 %v1289, %v1288
    %v1319 = vpack.c.b16 %v1291, %v1290
    %v1320 = vpack.c.b16 %v1293, %v1292
    %v1321 = vpack.c.b16 %v1295, %v1294
    %v1322 = vpack.c.b16 %v1297, %v1296
    %v1323 = vpack.c.b16 %v1299, %v1298
    %v1324 = vpack.c.b16 %v1301, %v1300
    %v1325 = vpack.c.b16 %v1303, %v1302
    %v1326 = vpack.c.b16 %v1305, %v1304
    %v1327 = vpack.c.b16 %v1307, %v1306
    %v1328 = vpack.c.b16 %v1309, %v1308
    %v1329 = vpack.c.b16 %v1311, %v1310
    %v1330 = vpack.c.b16 %v1313, %v1312
    %v1331 = vpack.c.b16 %v1315, %v1314
    %1348 = vmatprep.subr.bf16.mxu0 0
    %1349 = vmatpush1.bf16.msra.mxu0 %v1323
    %1350 = vmatprep.subr.bf16.mxu0 0
    %1351 = vmatpush1.bf16.msra.mxu0 %v1322
    %1352 = vmatprep.subr.bf16.mxu0 0
    %1353 = vmatpush1.bf16.msra.mxu0 %v1321
    %1354 = vmatprep.subr.bf16.mxu0 0
    %1355 = vmatpush1.bf16.msra.mxu0 %v1320
    %1356 = vmatprep.subr.bf16.mxu0 0
    %1357 = vmatpush1.bf16.msra.mxu0 %v1319
    %1358 = vmatprep.subr.bf16.mxu0 0
    %1359 = vmatpush1.bf16.msra.mxu0 %v1318
    %1360 = vmatprep.subr.bf16.mxu0 0
    %1361 = vmatpush1.bf16.msra.mxu0 %v1317
    %1362 = vmatprep.subr.bf16.mxu0 0
    %1363 = vmatpush1.bf16.msra.mxu0 %v1316
    %1364 = vmatprep.subr.bf16.mxu0 0
    %1365 = vmatpush2.bf16.msra.mxu0 %v1331
    %1366 = vmatprep.subr.bf16.mxu0 0
    %1367 = vmatpush2.bf16.msra.mxu0 %v1330
    %1368 = vmatprep.subr.bf16.mxu0 0
    %1369 = vmatpush2.bf16.msra.mxu0 %v1329
    %1370 = vmatprep.subr.bf16.mxu0 0
    %1371 = vmatpush2.bf16.msra.mxu0 %v1328
    %1372 = vmatprep.subr.bf16.mxu0 0
    %1373 = vmatpush2.bf16.msra.mxu0 %v1327
    %1374 = vmatprep.subr.bf16.mxu0 0
    %1375 = vmatpush2.bf16.msra.mxu0 %v1326
    %1376 = vmatprep.subr.bf16.mxu0 0
    %1377 = vmatpush2.bf16.msra.mxu0 %v1325
    %1378 = vmatprep.subr.bf16.mxu0 0
    %1379 = vmatpush2.bf16.msra.mxu0 %v1324
    %1380 = vmatprep.mubr.bf16.mxu0 %v1212
    %1381 = vmatmul.mubr.bf16.gmra.mxu0 %v1211
    %v1382 = vpop.f32.mrf.mxu0
    %v1383 = vadd.f32 %v1250, %v1382
    %v1384 = vpop.f32.mrf.mxu0
    %v1385 = vpop.f32.mrf.mxu0
    %v1386 = vadd.f32 %v1250, %v1385
    %v1387 = vpop.f32.mrf.mxu0
    %1388 = vdwg.mxu0
    %1389 = vst [vmem:[%s12] sm:$0xff] %v1383
    %1390 = vst [vmem:[%s12 + $0x8] sm:$0xff] %v1386
    // Predicated region
    $region70: #{_forward.1} parent=1 // pred_check
      _
    $region71: #{_forward.1} parent=1 // pred_check_branch
      %1392 = sbr.rel (0) target = $region73
    $region72: #{_forward.1} parent=1 // pred_region
      %s1394 = ssub.s32 256, 256
      %1395 = vsyncadd [#allocation4], %s1394
      %s1396 = sshll.u32 [#allocation13], 4
      %s1397 = int_to_ptr.vmem [resolvable:$true] %s1396
      %1402 = dma.vmem_to_hbm [thread:$0]  %s1397, 256, %s11, [#allocation4], 128, 128, 8
    $region73: #{_forward.1} parent=1 // pred_fallthru
      _
    // Predicated region
    $region74: #{_forward.1} parent=1 // pred_check
      _
    $region75: #{_forward.1} parent=1 // pred_check_branch
      %1404 = sbr.rel (0) target = $region77
    $region76: #{_forward.1} parent=1 // pred_region
      _
    $region77: #{_forward.1} parent=1 // pred_fallthru
      _
    // Predicated region
    $region78: #{_forward.1} parent=1 // pred_check
      _
    $region79: #{_forward.1} parent=1 // pred_check_branch
      %1406 = sbr.rel (0) target = $region81
    $region80: #{_forward.1} parent=1 // pred_region
      %1407 = dma.done [#allocation4], 256
    $region81: #{_forward.1} parent=1 // pred_fallthru
      _
    // Predicated region
    $region82: #{_forward.1} parent=1 // pred_check
      _
    $region83: #{_forward.1} parent=1 // pred_check_branch
      %1409 = sbr.rel (0) target = $region85
    $region84: #{_forward.1} parent=1 // pred_region
      _
    $region85: #{_forward.1} parent=1 // pred_fallthru
      _
    %1410 = vsyncpa [#allocation3], 1
    %1411 = vsyncpa [#allocation6], 1
    %1412 = vsyncpa [#allocation9], 1
    %1413 = vsyncpa [#allocation12], 1
    %1414 = vsyncpa [#allocation4], 1

</llo_original>
